<compile_context>
chip_gen: v6e
topology: v6e:2x2x1
jax: 0.10.0
libtpu: 0.0.40
codegen_flags: <defaults>
</compile_context>

<pallas_src>
import functools
import jax
import jax.numpy as jnp
import numpy as np
from jax.experimental import pallas as pl
from jax.experimental.pallas import tpu as pltpu


def _decoder_kernel(xT_ref, wcat_ref, wy_ref, o_ref, aug_ref, *,
                    out_sizes, hidden, use_tanh, mxu_dtype):
    """Transposed layout: every ref is (features, batch_tile); batch sits on lanes."""
    H = hidden
    num_layers = len(out_sizes)
    d_in = xT_ref.shape[0]
    tile = xT_ref.shape[1]

    # Bias fold: augment x with a constant ones row so a single MXU matmul computes
    # W_lx @ x + b_l for every layer at once (no VPU broadcast-add of the bias).
    aug_ref[0:d_in, :] = xT_ref[...]
    aug_ref[d_in:d_in + 1, :] = jnp.ones((1, tile), jnp.float32)

    # x-side projection for ALL layers, kept in f32 (K = d_in+1, essentially free).
    xproj = jnp.dot(wcat_ref[...], aug_ref[...],
                    preferred_element_type=jnp.float32)        # (sum_out, tile) f32

    # Layer 0: relu, then a single cast to the MXU dtype for the y-path matmuls.
    y = jnp.maximum(xproj[0:H], 0.0).astype(mxu_dtype)         # (H, tile)

    p_off = H   # row offset into xproj
    w_off = 0   # row offset into the concatenated y-side weights
    for l in range(1, num_layers):                             # static python unroll
        out_l = out_sizes[l]
        w = wy_ref[w_off:w_off + out_l]                        # (out_l, H), mxu_dtype
        z = jnp.dot(w, y, preferred_element_type=jnp.float32) \
            + xproj[p_off:p_off + out_l]                       # x-contribution + bias
        if l < num_layers - 1:
            y = jnp.maximum(z, 0.0).astype(mxu_dtype)
        else:
            y = z                                              # final layer: no relu
        p_off += out_l
        w_off += out_l

    if use_tanh:                                               # static flag
        y = jnp.tanh(y)
    o_ref[...] = y.astype(o_ref.dtype)                         # lane-dense store


def _default_tile_m(N):
    # Grid steps are a serial loop on v5e/v6e (single TC) and are sharded across the
    # two TensorCores on v7x.  Heuristic: one big step for small batches, otherwise
    # >=2048-wide tiles (roughly two steps' worth of work) capped at 4096.
    if N <= 2048:
        return N
    half = pl.cdiv(pl.cdiv(N, 2), 128) * 128
    return int(min(half, 4096))


def implicit_decoder_forward_t(xT, params, *, use_tanh=True, tile_m=None,
                               mxu_dtype=jnp.bfloat16, out_dtype=jnp.float32):
    """Transposed I/O path: xT (d_in, N) float32 -> (d_out, N).  No extra HBM passes."""
    d_in, N = xT.shape
    num_layers = sum(1 for k in params if k.startswith("w"))
    assert num_layers >= 2
    H = params["w0"].shape[0]
    d_out = params[f"w{num_layers - 1}"].shape[0]
    out_sizes = tuple(H if l < num_layers - 1 else d_out for l in range(num_layers))
    # Perf guard (review): sublane-aligned xproj/wy slices require H to be 8-aligned.
    assert H % 8 == 0, "hidden_size must be a multiple of 8 for aligned static slicing"

    # Fused x-side projection weight with bias folded in as a trailing column:
    #   xproj = [W0|b0 ; W1x|b1 ; ... ; W(L-1)x|b(L-1)] @ [x ; 1]     (kept in f32)
    wcat = jnp.concatenate(
        [jnp.concatenate([params["w0"], params["b0"][:, None]], axis=1)] +
        [jnp.concatenate([params[f"w{l}"][:, H:], params[f"b{l}"][:, None]], axis=1)
         for l in range(1, num_layers)],
        axis=0).astype(jnp.float32)                             # (3H+d_out, d_in+1)

    # y-side weights for layers 1..L-1, one resident operand, sliced in-kernel.
    wy = jnp.concatenate([params[f"w{l}"][:, :H] for l in range(1, num_layers)],
                         axis=0).astype(mxu_dtype)              # (2H+d_out, H)

    if tile_m is None:
        tile_m = _default_tile_m(N)
    if tile_m >= N:
        tile_m, n_tiles = N, 1                                  # block == full array dim
    else:
        assert tile_m % 128 == 0, "tile_m must be a multiple of 128 when tiling the batch"
        n_tiles = pl.cdiv(N, tile_m)                            # last tile ragged -> masked

    sum_out = int(wcat.shape[0])
    wy_rows = int(wy.shape[0])
    cost = pl.CostEstimate(
        flops=2 * N * (sum_out * (d_in + 1) + wy_rows * H),
        transcendentals=N * d_out if use_tanh else 0,
        bytes_accessed=int(d_in * N * 4 + d_out * N * jnp.dtype(out_dtype).itemsize
                           + wcat.size * 4 + wy.size * jnp.dtype(mxu_dtype).itemsize),
    )

    kernel = functools.partial(_decoder_kernel, out_sizes=out_sizes, hidden=H,
                               use_tanh=use_tanh, mxu_dtype=mxu_dtype)

    # Constant index_maps: weights are DMA'd once and stay resident across grid steps.
    resident = lambda a: pl.BlockSpec(a.shape, lambda i: (0, 0))

    outT = pl.pallas_call(
        kernel,
        out_shape=jax.ShapeDtypeStruct((d_out, N), out_dtype),
        grid=(n_tiles,),
        in_specs=[
            pl.BlockSpec((d_in, tile_m), lambda i: (0, i)),     # batch tile, lanes dense
            resident(wcat),
            resident(wy),
        ],
        out_specs=pl.BlockSpec((d_out, tile_m), lambda i: (0, i)),  # lane-dense store
        scratch_shapes=[pltpu.VMEM((d_in + 1, tile_m), jnp.float32)],  # [x; 1] staging
        compiler_params=pltpu.CompilerParams(dimension_semantics=("parallel",)),
        cost_estimate=cost,
    )(xT.astype(jnp.float32), wcat, wy)
    return outT


def implicit_decoder_forward(x, params, **kwargs):
    """Compat wrapper for the module's (N, d_in) -> (N, d_out) layout (adds transposes)."""
    return implicit_decoder_forward_t(x.T, params, **kwargs).T


def _init_weight_norm_linear(key, in_size, out_size):
    """Deterministic synthetic weight_norm(Linear) -> effective (out, in) weight + bias."""
    kv, kg, kb = jax.random.split(key, 3)
    v = jax.random.normal(kv, (out_size, in_size), jnp.float32) * 0.1
    g = 0.5 + jax.random.uniform(kg, (out_size,), jnp.float32)
    b = jax.random.normal(kb, (out_size,), jnp.float32) * 0.01
    row_norm = jnp.sqrt(jnp.sum(v * v, axis=1, keepdims=True))
    w_eff = g[:, None] * v / row_norm                   # (out, in), torch Linear layout
    return w_eff, b


def make_params(key, input_size, output_size, hidden_size, num_layers=4):
    """ImplicitDecoder layers with input_spacing=0:
       layer0: input_size -> H ; middle: input_size+H -> H ; last: input_size+H -> output_size."""
    keys = jax.random.split(key, num_layers)
    params = {}
    for l in range(num_layers):
        in_size = input_size if l == 0 else input_size + hidden_size
        out_size = output_size if l == num_layers - 1 else hidden_size
        w, b = _init_weight_norm_linear(keys[l], in_size, out_size)
        params[f"w{l}"] = w
        params[f"b{l}"] = b
    return params


def reference_forward(x, params, use_tanh=True):
    """Plain-JAX reference matching ImplicitDecoder.forward (input_spacing=0)."""
    num_layers = sum(1 for k in params if k.startswith("w"))
    y = x
    for l in range(num_layers):
        if l != 0:
            y = jnp.concatenate([y, x], axis=1)
        y = y @ params[f"w{l}"].T + params[f"b{l}"]
        if l < num_layers - 1:
            y = jax.nn.relu(y)
        elif use_tanh:
            y = jnp.tanh(y)
    return y


if __name__ == "__main__":
    # ImplicitDecoder(input_size=2, output_size=4, hidden_size=32, num_layers=4,
    #                 input_spacing=0, use_tanh=True)   -- small demo shapes
    input_size, output_size, hidden_size, num_layers = 2, 4, 32, 4
    batch = 1000      # deliberately NOT a multiple of 128 -> exercises ragged-tile path

    key = jax.random.PRNGKey(0)
    k_x, k_p = jax.random.split(key)
    x = jax.random.normal(k_x, (batch, input_size), jnp.float32)
    params = make_params(k_p, input_size, output_size, hidden_size, num_layers)

    ref = reference_forward(x, params, use_tanh=True)

    # 1) all-f32 path, single grid step (tile_m defaults to N): tight tolerance.
    out_f32 = implicit_decoder_forward(x, params, mxu_dtype=jnp.float32)
    out_f32 = jax.block_until_ready(out_f32)
    np.testing.assert_allclose(np.asarray(out_f32), np.asarray(ref),
                               rtol=1e-5, atol=1e-5)

    # 2) bf16 hidden path + multi-step grid with a ragged last tile (1000 = 512 + 488).
    out_bf16 = implicit_decoder_forward(x, params, mxu_dtype=jnp.bfloat16, tile_m=512)
    out_bf16 = jax.block_until_ready(out_bf16)
    np.testing.assert_allclose(np.asarray(out_bf16), np.asarray(ref),
                               rtol=5e-2, atol=5e-2)

    # 3) transposed-I/O entry point (no wrapper transpose passes around the kernel).
    out_t = implicit_decoder_forward_t(x.T, params, mxu_dtype=jnp.bfloat16)
    out_t = jax.block_until_ready(out_t)
    np.testing.assert_allclose(np.asarray(out_t.T), np.asarray(ref),
                               rtol=5e-2, atol=5e-2)

    print("KERNEL_OK")
</pallas_src>

<mosaic_0001>
module attributes {stable_mosaic.version = 11 : i64} {
  func.func @_decoder_kernel(%arg0: i32, %arg1: memref<2x1000xf32, #tpu.memory_space<vmem>>, %arg2: memref<100x3xf32, #tpu.memory_space<vmem>>, %arg3: memref<68x32xf32, #tpu.memory_space<vmem>>, %arg4: memref<4x1000xf32, #tpu.memory_space<vmem>>, %arg5: memref<3x1000xf32, #tpu.memory_space<vmem>>) attributes {dimension_semantics = [#tpu.dimension_semantics<parallel>], iteration_bounds = array<i64: 1>, scalar_prefetch = 0 : i64, scratch_operands = 1 : i64, tpu.core_type = #tpu.core_type<tc>, window_params = [{transform_indices = @transform_0, window_bounds = array<i64: 2, 1000>}, {pipeline_mode = #tpu.pipeline_mode<synchronous>, transform_indices = @transform_1, window_bounds = array<i64: 100, 3>}, {pipeline_mode = #tpu.pipeline_mode<synchronous>, transform_indices = @transform_2, window_bounds = array<i64: 68, 32>}, {transform_indices = @transform_3, window_bounds = array<i64: 4, 1000>}]} {
    %c0 = arith.constant 0 : index
    %c0_0 = arith.constant 0 : index
    %0 = vector.load %arg1[%c0, %c0_0] : memref<2x1000xf32, #tpu.memory_space<vmem>>, vector<2x1000xf32>
    %c0_1 = arith.constant 0 : index
    %c0_2 = arith.constant 0 : index
    %1 = vector.load %arg5[%c0_1, %c0_2] : memref<3x1000xf32, #tpu.memory_space<vmem>>, vector<2x1000xf32>
    tpu.vector_store %arg5[%c0_1, %c0_2], %0 {strides = array<i32>} : memref<3x1000xf32, #tpu.memory_space<vmem>>, vector<2x1000xf32>,
    %cst = arith.constant 1.000000e+00 : f32
    %2 = vector.broadcast %cst : f32 to vector<1x1000xf32>
    %c2 = arith.constant 2 : index
    %c0_3 = arith.constant 0 : index
    %3 = vector.load %arg5[%c2, %c0_3] : memref<3x1000xf32, #tpu.memory_space<vmem>>, vector<1x1000xf32>
    tpu.vector_store %arg5[%c2, %c0_3], %2 {strides = array<i32>} : memref<3x1000xf32, #tpu.memory_space<vmem>>, vector<1x1000xf32>,
    %c0_4 = arith.constant 0 : index
    %c0_5 = arith.constant 0 : index
    %4 = vector.load %arg2[%c0_4, %c0_5] : memref<100x3xf32, #tpu.memory_space<vmem>>, vector<100x3xf32>
    %c0_6 = arith.constant 0 : index
    %c0_7 = arith.constant 0 : index
    %5 = vector.load %arg5[%c0_6, %c0_7] : memref<3x1000xf32, #tpu.memory_space<vmem>>, vector<3x1000xf32>
    %cst_8 = arith.constant dense<0.000000e+00> : vector<100x1000xf32>
    %6 = tpu.matmul %4, %5, %cst_8 {dimension_numbers = #tpu.dot_dimension_numbers<[1], [0], [0], [1], [0, 0, 1, 1], [], []>} : vector<100x3xf32>, vector<3x1000xf32>, vector<100x1000xf32> -> vector<100x1000xf32>
    %7 = vector.extract_strided_slice %6 {offsets = [0, 0], sizes = [32, 1000], strides = [1, 1]} : vector<100x1000xf32> to vector<32x1000xf32>
    %cst_9 = arith.constant 0.000000e+00 : f32
    %8 = vector.broadcast %cst_9 : f32 to vector<32x1000xf32>
    %9 = arith.maximumf %7, %8 : vector<32x1000xf32>
    %c0_10 = arith.constant 0 : index
    %c0_11 = arith.constant 0 : index
    %10 = vector.load %arg3[%c0_10, %c0_11] : memref<68x32xf32, #tpu.memory_space<vmem>>, vector<32x32xf32>
    %cst_12 = arith.constant dense<0.000000e+00> : vector<32x1000xf32>
    %11 = tpu.matmul %10, %9, %cst_12 {dimension_numbers = #tpu.dot_dimension_numbers<[1], [0], [0], [1], [0, 0, 1, 1], [], []>} : vector<32x32xf32>, vector<32x1000xf32>, vector<32x1000xf32> -> vector<32x1000xf32>
    %12 = vector.extract_strided_slice %6 {offsets = [32, 0], sizes = [32, 1000], strides = [1, 1]} : vector<100x1000xf32> to vector<32x1000xf32>
    %13 = arith.addf %11, %12 : vector<32x1000xf32>
    %cst_13 = arith.constant 0.000000e+00 : f32
    %14 = vector.broadcast %cst_13 : f32 to vector<32x1000xf32>
    %15 = arith.maximumf %13, %14 : vector<32x1000xf32>
    %c32 = arith.constant 32 : index
    %c0_14 = arith.constant 0 : index
    %16 = vector.load %arg3[%c32, %c0_14] : memref<68x32xf32, #tpu.memory_space<vmem>>, vector<32x32xf32>
    %cst_15 = arith.constant dense<0.000000e+00> : vector<32x1000xf32>
    %17 = tpu.matmul %16, %15, %cst_15 {dimension_numbers = #tpu.dot_dimension_numbers<[1], [0], [0], [1], [0, 0, 1, 1], [], []>} : vector<32x32xf32>, vector<32x1000xf32>, vector<32x1000xf32> -> vector<32x1000xf32>
    %18 = vector.extract_strided_slice %6 {offsets = [64, 0], sizes = [32, 1000], strides = [1, 1]} : vector<100x1000xf32> to vector<32x1000xf32>
    %19 = arith.addf %17, %18 : vector<32x1000xf32>
    %cst_16 = arith.constant 0.000000e+00 : f32
    %20 = vector.broadcast %cst_16 : f32 to vector<32x1000xf32>
    %21 = arith.maximumf %19, %20 : vector<32x1000xf32>
    %c64 = arith.constant 64 : index
    %c0_17 = arith.constant 0 : index
    %22 = vector.load %arg3[%c64, %c0_17] : memref<68x32xf32, #tpu.memory_space<vmem>>, vector<4x32xf32>
    %cst_18 = arith.constant dense<0.000000e+00> : vector<4x1000xf32>
    %23 = tpu.matmul %22, %21, %cst_18 {dimension_numbers = #tpu.dot_dimension_numbers<[1], [0], [0], [1], [0, 0, 1, 1], [], []>} : vector<4x32xf32>, vector<32x1000xf32>, vector<4x1000xf32> -> vector<4x1000xf32>
    %24 = vector.extract_strided_slice %6 {offsets = [96, 0], sizes = [4, 1000], strides = [1, 1]} : vector<100x1000xf32> to vector<4x1000xf32>
    %25 = arith.addf %23, %24 : vector<4x1000xf32>
    %26 = math.tanh %25 : vector<4x1000xf32>
    %c0_19 = arith.constant 0 : index
    %c0_20 = arith.constant 0 : index
    %27 = vector.load %arg4[%c0_19, %c0_20] : memref<4x1000xf32, #tpu.memory_space<vmem>>, vector<4x1000xf32>
    tpu.vector_store %arg4[%c0_19, %c0_20], %26 {strides = array<i32>} : memref<4x1000xf32, #tpu.memory_space<vmem>>, vector<4x1000xf32>,
    return
  }
  func.func @transform_0(%arg0: i32) -> (i32, i32) {
    %c0_i32 = arith.constant 0 : i32
    %c0_i32_0 = arith.constant 0 : i32
    return %c0_i32, %arg0 : i32, i32
  }
  func.func @transform_1(%arg0: i32) -> (i32, i32) {
    %c0_i32 = arith.constant 0 : i32
    %c0_i32_0 = arith.constant 0 : i32
    %c0_i32_1 = arith.constant 0 : i32
    return %c0_i32, %c0_i32_0 : i32, i32
  }
  func.func @transform_2(%arg0: i32) -> (i32, i32) {
    %c0_i32 = arith.constant 0 : i32
    %c0_i32_0 = arith.constant 0 : i32
    %c0_i32_1 = arith.constant 0 : i32
    return %c0_i32, %c0_i32_0 : i32, i32
  }
  func.func @transform_3(%arg0: i32) -> (i32, i32) {
    %c0_i32 = arith.constant 0 : i32
    %c0_i32_0 = arith.constant 0 : i32
    return %c0_i32, %arg0 : i32, i32
  }
}

</mosaic_0001>

<llo_original>
// kernel: tpu_custom_call.1
$region0: #{tpu_custom_call.1}
  #allocation0 [shape = 'u32[]', space=smem, size = 0x4, offset = 0x4, fixed_abs, tag = 'smem constant byte address 0x4 - core index']
  #allocation1 [shape = 'u32[144,128]{1,0:T(1,128)}', space=vmem, size = 0x12000, scoped, tag = 'internal scratch']
  #allocation2 [shape = 'f32[3,1000]{1,0:T(4,128)}', space=vmem, size = 0x4000, scoped, tag = 'scratch operand']
  %s0 = inlined_call_operand.vmem [shape: f32[2,1000], index: 0, kind: input, shape index: {}]
  %s1 = inlined_call_operand.vmem [shape: f32[100,3], index: 1, kind: input, shape index: {}]
  %s2 = inlined_call_operand.vmem [shape: f32[68,32], index: 2, kind: input, shape index: {}]
  %s3 = inlined_call_operand.hbm [shape: f32[4,1000], index: 3, kind: output, shape index: {}]
  %s4 = sld [smem:[#allocation0]]
  $region22: #{tpu_custom_call.1} parent=0
    _
  %s6 = ssub.s32 1, %s4
  %s7 = scalar_select 0, %s6, %s4
  $region1: #{tpu_custom_call.1} parent=0
    #allocation3 [shape = 'u8[16384]{0}', space=vmem, size = 0x4000, scoped, tag = 'output window, operand 0, single buffered']
    #allocation4 [shape = 's32[1]{0}', space=sflag, size = 0x4, scoped, tag = 'scoped memory for tpu_custom_call.1']
    %8 = vsyncpa [#allocation4], 0
    // Predicated region
    $region2: #{tpu_custom_call.1} parent=1 // pred_check
      _
    $region3: #{tpu_custom_call.1} parent=1 // pred_check_branch
      %10 = sbr.rel (0) target = $region5
    $region4: #{tpu_custom_call.1} parent=1 // pred_region
      _
    $region5: #{tpu_custom_call.1} parent=1 // pred_fallthru
      _
    // Predicated region
    $region6: #{tpu_custom_call.1} parent=1 // pred_check
      _
    $region7: #{tpu_custom_call.1} parent=1 // pred_check_branch
      %12 = sbr.rel (0) target = $region9
    $region8: #{tpu_custom_call.1} parent=1 // pred_region
      _
    $region9: #{tpu_custom_call.1} parent=1 // pred_fallthru
      _
    // Predicated region
    $region10: #{tpu_custom_call.1} parent=1 // pred_check
      _
    $region11: #{tpu_custom_call.1} parent=1 // pred_check_branch
      %14 = sbr.rel (0) target = $region13
    $region12: #{tpu_custom_call.1} parent=1 // pred_region
      _
    $region13: #{tpu_custom_call.1} parent=1 // pred_fallthru
      _
    %v15 = vld [vmem:[%s0] sm:$0xff]
    %v16 = vld [vmem:[%s0 + $0x8] sm:$0xff]
    %v19 = vcombine.high %v15, %v15
    %v21 = vunpack.c.l.s4 1983009808
    %v22 = vunpack.c.0.s8 %v21
    %v23 = vlaneseq
    %v24 = vshrl.u32 %v23, 7
    %v25 = vsub.s32 %v22, %v24
    %v26 = vrot.slane %v15, %v25
    %v28 = vunpack.c.l.s4 1983009808
    %v29 = vunpack.c.0.s8 %v28
    %v30 = vlaneseq
    %v31 = vshrl.u32 %v30, 7
    %v32 = vsub.s32 %v29, %v31
    %v33 = vrot.slane %v19, %v32
    %v34 = vcombine.high %v16, %v16
    %v36 = vunpack.c.l.s4 1983009808
    %v37 = vunpack.c.0.s8 %v36
    %v38 = vlaneseq
    %v39 = vshrl.u32 %v38, 7
    %v40 = vsub.s32 %v37, %v39
    %v41 = vrot.slane %v16, %v40
    %v43 = vunpack.c.l.s4 1983009808
    %v44 = vunpack.c.0.s8 %v43
    %v45 = vlaneseq
    %v46 = vshrl.u32 %v45, 7
    %v47 = vsub.s32 %v44, %v46
    %v48 = vrot.slane %v34, %v47
    %53 = vst [vmem:[#allocation2] sm:$0x33] %v26
    %54 = vst [vmem:[#allocation2 + $0x8] sm:$0x33] %v33
    %55 = vst [vmem:[#allocation2 + $0x10] sm:$0x33] %v41
    %vm56 = vcmask 1041408
    %vm57 = vcmask 848900
    %vm58 = vmor %vm57, %vm56
    %59 = vst.msk [vmem:[#allocation2 + $0x18] sm:$0x33] %vm58, %v48
    %v60 = vlaneseq
    %vm61 = vcmp.ge.s32.totalorder %v60, 0
    %vm62 = vcmp.lt.s32.totalorder %v60, 1000
    %vm63 = vmand %vm61, %vm62
    %s64 = scalar_lea.vmem [#allocation2], 2
    %65 = vst.msk [vmem:[%s64] ss:$4 sm:$0xff] %vm63, 1.0
    %v66 = vld [vmem:[%s1] sm:$0xff]
    %v67 = vld [vmem:[%s1 + $0x8] sm:$0xff]
    %v68 = vld [vmem:[%s1 + $0x10] sm:$0xff]
    %v69 = vld [vmem:[%s1 + $0x18] sm:$0xff]
    %v70 = vld [vmem:[%s1 + $0x20] sm:$0xff]
    %v71 = vld [vmem:[%s1 + $0x28] sm:$0xff]
    %v72 = vld [vmem:[%s1 + $0x30] sm:$0xff]
    %v73 = vld [vmem:[%s1 + $0x38] sm:$0xff]
    %v74 = vld [vmem:[%s1 + $0x40] sm:$0xff]
    %v75 = vld [vmem:[%s1 + $0x48] sm:$0xff]
    %v76 = vld [vmem:[%s1 + $0x50] sm:$0xff]
    %v77 = vld [vmem:[%s1 + $0x58] sm:$0xff]
    %v78 = vld [vmem:[%s1 + $0x60] sm:$0xf]
    %v79 = vld [vmem:[#allocation2] sm:$0x77]
    %v80 = vld [vmem:[#allocation2 + $0x8] sm:$0x77]
    %v81 = vld [vmem:[#allocation2 + $0x10] sm:$0x77]
    %v82 = vld [vmem:[#allocation2 + $0x18] sm:$0x77]
    %v87 = vcombine.high %v79, %v79
    %v88 = vcombine.high %v80, %v80
    %v89 = vcombine.high %v81, %v81
    %v90 = vcombine.high %v82, %v82
    %vm91 = vcmask 23552
    %v93 = vsel %vm91, %v66, 0
    %v96 = vsel %vm91, %v67, 0
    %v99 = vsel %vm91, %v68, 0
    %v102 = vsel %vm91, %v69, 0
    %v105 = vsel %vm91, %v70, 0
    %v108 = vsel %vm91, %v71, 0
    %v111 = vsel %vm91, %v72, 0
    %v114 = vsel %vm91, %v73, 0
    %v117 = vsel %vm91, %v74, 0
    %v120 = vsel %vm91, %v75, 0
    %v123 = vsel %vm91, %v76, 0
    %v126 = vsel %vm91, %v77, 0
    %v129 = vsel %vm91, %v78, 0
    %vm131 = vcmask 1042432
    %v132 = vsel %vm131, %v79, 0
    %v134 = vsel %vm131, %v87, 0
    %v136 = vsel %vm131, %v80, 0
    %v138 = vsel %vm131, %v88, 0
    %v140 = vsel %vm131, %v81, 0
    %v142 = vsel %vm131, %v89, 0
    %v144 = vsel %vm131, %v82, 0
    %v146 = vsel %vm131, %v90, 0
    %148 = vmatprep.subr.mxu0 0.0
    %149 = vmatpush1.msra.mxu0 0.0
    %150 = vmatprep.subr.mxu0 0.0
    %151 = vmatpush1.msra.mxu0 0.0
    %152 = vmatprep.subr.mxu0 0.0
    %153 = vmatpush1.msra.mxu0 0.0
    %154 = vmatprep.subr.mxu0 0.0
    %155 = vmatpush1.msra.mxu0 0.0
    %156 = vmatprep.subr.mxu0 0.0
    %157 = vmatpush1.msra.mxu0 0.0
    %158 = vmatprep.subr.mxu0 0.0
    %159 = vmatpush1.msra.mxu0 0.0
    %160 = vmatprep.subr.mxu0 0.0
    %161 = vmatpush1.msra.mxu0 0.0
    %162 = vmatprep.subr.mxu0 0.0
    %163 = vmatpush1.msra.mxu0 0.0
    %164 = vmatprep.subr.mxu0 0.0
    %165 = vmatpush1.msra.mxu0 0.0
    %166 = vmatprep.subr.mxu0 0.0
    %167 = vmatpush1.msra.mxu0 0.0
    %168 = vmatprep.subr.mxu0 0.0
    %169 = vmatpush1.msra.mxu0 0.0
    %170 = vmatprep.subr.mxu0 0.0
    %171 = vmatpush1.msra.mxu0 0.0
    %172 = vmatprep.subr.mxu0 0.0
    %173 = vmatpush1.msra.mxu0 0.0
    %174 = vmatprep.subr.mxu0 0.0
    %175 = vmatpush1.msra.mxu0 0.0
    %176 = vmatprep.subr.mxu0 0.0
    %177 = vmatpush1.msra.mxu0 0.0
    %178 = vmatprep.subr.mxu0 %v134
    %179 = vmatpush1.msra.mxu0 %v132
    %180 = vmatprep.subr.mxu0 0.0
    %181 = vmatpush2.msra.mxu0 0.0
    %182 = vmatprep.subr.mxu0 0.0
    %183 = vmatpush2.msra.mxu0 0.0
    %184 = vmatprep.subr.mxu0 0.0
    %185 = vmatpush2.msra.mxu0 0.0
    %186 = vmatprep.subr.mxu0 0.0
    %187 = vmatpush2.msra.mxu0 0.0
    %188 = vmatprep.subr.mxu0 0.0
    %189 = vmatpush2.msra.mxu0 0.0
    %190 = vmatprep.subr.mxu0 0.0
    %191 = vmatpush2.msra.mxu0 0.0
    %192 = vmatprep.subr.mxu0 0.0
    %193 = vmatpush2.msra.mxu0 0.0
    %194 = vmatprep.subr.mxu0 0.0
    %195 = vmatpush2.msra.mxu0 0.0
    %196 = vmatprep.subr.mxu0 0.0
    %197 = vmatpush2.msra.mxu0 0.0
    %198 = vmatprep.subr.mxu0 0.0
    %199 = vmatpush2.msra.mxu0 0.0
    %200 = vmatprep.subr.mxu0 0.0
    %201 = vmatpush2.msra.mxu0 0.0
    %202 = vmatprep.subr.mxu0 0.0
    %203 = vmatpush2.msra.mxu0 0.0
    %204 = vmatprep.subr.mxu0 0.0
    %205 = vmatpush2.msra.mxu0 0.0
    %206 = vmatprep.subr.mxu0 0.0
    %207 = vmatpush2.msra.mxu0 0.0
    %208 = vmatprep.subr.mxu0 0.0
    %209 = vmatpush2.msra.mxu0 0.0
    %210 = vmatprep.subr.mxu0 0.0
    %211 = vmatpush2.msra.mxu0 0.0
    %212 = vmatprep.mubr.f32.mxu0 0.0
    %213 = vmatmul.mubr.f32.gmra.mxu0 %v93
    %v214 = vpop.f32.mrf.mxu0
    %v215 = vadd.f32 0.0, %v214
    %v216 = vpop.f32.mrf.mxu0
    %v217 = vadd.f32 0.0, %v216
    %218 = vmatprep.mubr.f32.mxu0 0.0
    %219 = vmatmul.mubr.f32.gmra.mxu0 %v96
    %v220 = vpop.f32.mrf.mxu0
    %v221 = vadd.f32 0.0, %v220
    %v222 = vpop.f32.mrf.mxu0
    %v223 = vadd.f32 0.0, %v222
    %224 = vmatprep.mubr.f32.mxu0 0.0
    %225 = vmatmul.mubr.f32.gmra.mxu0 %v99
    %v226 = vpop.f32.mrf.mxu0
    %v227 = vadd.f32 0.0, %v226
    %v228 = vpop.f32.mrf.mxu0
    %v229 = vadd.f32 0.0, %v228
    %230 = vmatprep.mubr.f32.mxu0 0.0
    %231 = vmatmul.mubr.f32.gmra.mxu0 %v102
    %v232 = vpop.f32.mrf.mxu0
    %v233 = vadd.f32 0.0, %v232
    %v234 = vpop.f32.mrf.mxu0
    %v235 = vadd.f32 0.0, %v234
    %236 = vmatprep.mubr.f32.mxu0 0.0
    %237 = vmatmul.mubr.f32.gmra.mxu0 %v105
    %v238 = vpop.f32.mrf.mxu0
    %v239 = vadd.f32 0.0, %v238
    %v240 = vpop.f32.mrf.mxu0
    %v241 = vadd.f32 0.0, %v240
    %242 = vmatprep.mubr.f32.mxu0 0.0
    %243 = vmatmul.mubr.f32.gmra.mxu0 %v108
    %v244 = vpop.f32.mrf.mxu0
    %v245 = vadd.f32 0.0, %v244
    %v246 = vpop.f32.mrf.mxu0
    %v247 = vadd.f32 0.0, %v246
    %248 = vmatprep.mubr.f32.mxu0 0.0
    %249 = vmatmul.mubr.f32.gmra.mxu0 %v111
    %v250 = vpop.f32.mrf.mxu0
    %v251 = vadd.f32 0.0, %v250
    %v252 = vpop.f32.mrf.mxu0
    %v253 = vadd.f32 0.0, %v252
    %254 = vmatprep.mubr.f32.mxu0 0.0
    %255 = vmatmul.mubr.f32.gmra.mxu0 %v114
    %v256 = vpop.f32.mrf.mxu0
    %v257 = vadd.f32 0.0, %v256
    %v258 = vpop.f32.mrf.mxu0
    %v259 = vadd.f32 0.0, %v258
    %260 = vmatprep.mubr.f32.mxu0 0.0
    %261 = vmatmul.mubr.f32.gmra.mxu0 %v117
    %v262 = vpop.f32.mrf.mxu0
    %v263 = vadd.f32 0.0, %v262
    %v264 = vpop.f32.mrf.mxu0
    %v265 = vadd.f32 0.0, %v264
    %266 = vmatprep.mubr.f32.mxu0 0.0
    %267 = vmatmul.mubr.f32.gmra.mxu0 %v120
    %v268 = vpop.f32.mrf.mxu0
    %v269 = vadd.f32 0.0, %v268
    %v270 = vpop.f32.mrf.mxu0
    %v271 = vadd.f32 0.0, %v270
    %272 = vmatprep.mubr.f32.mxu0 0.0
    %273 = vmatmul.mubr.f32.gmra.mxu0 %v123
    %v274 = vpop.f32.mrf.mxu0
    %v275 = vadd.f32 0.0, %v274
    %v276 = vpop.f32.mrf.mxu0
    %v277 = vadd.f32 0.0, %v276
    %278 = vmatprep.mubr.f32.mxu0 0.0
    %279 = vmatmul.mubr.f32.gmra.mxu0 %v126
    %v280 = vpop.f32.mrf.mxu0
    %v281 = vadd.f32 0.0, %v280
    %v282 = vpop.f32.mrf.mxu0
    %v283 = vadd.f32 0.0, %v282
    %284 = vmatprep.mubr.f32.mxu0 0.0
    %285 = vmatmul.mubr.f32.gmra.mxu0 %v129
    %v286 = vpop.f32.mrf.mxu0
    %v287 = vadd.f32 0.0, %v286
    %v288 = vpop.f32.mrf.mxu0
    %v289 = vadd.f32 0.0, %v288
    %290 = vdwg.mxu0
    %291 = vmatprep.subr.mxu0 0.0
    %292 = vmatpush1.msra.mxu0 0.0
    %293 = vmatprep.subr.mxu0 0.0
    %294 = vmatpush1.msra.mxu0 0.0
    %295 = vmatprep.subr.mxu0 0.0
    %296 = vmatpush1.msra.mxu0 0.0
    %297 = vmatprep.subr.mxu0 0.0
    %298 = vmatpush1.msra.mxu0 0.0
    %299 = vmatprep.subr.mxu0 0.0
    %300 = vmatpush1.msra.mxu0 0.0
    %301 = vmatprep.subr.mxu0 0.0
    %302 = vmatpush1.msra.mxu0 0.0
    %303 = vmatprep.subr.mxu0 0.0
    %304 = vmatpush1.msra.mxu0 0.0
    %305 = vmatprep.subr.mxu0 0.0
    %306 = vmatpush1.msra.mxu0 0.0
    %307 = vmatprep.subr.mxu0 0.0
    %308 = vmatpush1.msra.mxu0 0.0
    %309 = vmatprep.subr.mxu0 0.0
    %310 = vmatpush1.msra.mxu0 0.0
    %311 = vmatprep.subr.mxu0 0.0
    %312 = vmatpush1.msra.mxu0 0.0
    %313 = vmatprep.subr.mxu0 0.0
    %314 = vmatpush1.msra.mxu0 0.0
    %315 = vmatprep.subr.mxu0 0.0
    %316 = vmatpush1.msra.mxu0 0.0
    %317 = vmatprep.subr.mxu0 0.0
    %318 = vmatpush1.msra.mxu0 0.0
    %319 = vmatprep.subr.mxu0 0.0
    %320 = vmatpush1.msra.mxu0 0.0
    %321 = vmatprep.subr.mxu0 %v138
    %322 = vmatpush1.msra.mxu0 %v136
    %323 = vmatprep.subr.mxu0 0.0
    %324 = vmatpush2.msra.mxu0 0.0
    %325 = vmatprep.subr.mxu0 0.0
    %326 = vmatpush2.msra.mxu0 0.0
    %327 = vmatprep.subr.mxu0 0.0
    %328 = vmatpush2.msra.mxu0 0.0
    %329 = vmatprep.subr.mxu0 0.0
    %330 = vmatpush2.msra.mxu0 0.0
    %331 = vmatprep.subr.mxu0 0.0
    %332 = vmatpush2.msra.mxu0 0.0
    %333 = vmatprep.subr.mxu0 0.0
    %334 = vmatpush2.msra.mxu0 0.0
    %335 = vmatprep.subr.mxu0 0.0
    %336 = vmatpush2.msra.mxu0 0.0
    %337 = vmatprep.subr.mxu0 0.0
    %338 = vmatpush2.msra.mxu0 0.0
    %339 = vmatprep.subr.mxu0 0.0
    %340 = vmatpush2.msra.mxu0 0.0
    %341 = vmatprep.subr.mxu0 0.0
    %342 = vmatpush2.msra.mxu0 0.0
    %343 = vmatprep.subr.mxu0 0.0
    %344 = vmatpush2.msra.mxu0 0.0
    %345 = vmatprep.subr.mxu0 0.0
    %346 = vmatpush2.msra.mxu0 0.0
    %347 = vmatprep.subr.mxu0 0.0
    %348 = vmatpush2.msra.mxu0 0.0
    %349 = vmatprep.subr.mxu0 0.0
    %350 = vmatpush2.msra.mxu0 0.0
    %351 = vmatprep.subr.mxu0 0.0
    %352 = vmatpush2.msra.mxu0 0.0
    %353 = vmatprep.subr.mxu0 0.0
    %354 = vmatpush2.msra.mxu0 0.0
    %355 = vmatprep.mubr.f32.mxu0 0.0
    %356 = vmatmul.mubr.f32.gmra.mxu0 %v93
    %v357 = vpop.f32.mrf.mxu0
    %v358 = vadd.f32 0.0, %v357
    %v359 = vpop.f32.mrf.mxu0
    %v360 = vadd.f32 0.0, %v359
    %361 = vmatprep.mubr.f32.mxu0 0.0
    %362 = vmatmul.mubr.f32.gmra.mxu0 %v96
    %v363 = vpop.f32.mrf.mxu0
    %v364 = vadd.f32 0.0, %v363
    %v365 = vpop.f32.mrf.mxu0
    %v366 = vadd.f32 0.0, %v365
    %367 = vmatprep.mubr.f32.mxu0 0.0
    %368 = vmatmul.mubr.f32.gmra.mxu0 %v99
    %v369 = vpop.f32.mrf.mxu0
    %v370 = vadd.f32 0.0, %v369
    %v371 = vpop.f32.mrf.mxu0
    %v372 = vadd.f32 0.0, %v371
    %373 = vmatprep.mubr.f32.mxu0 0.0
    %374 = vmatmul.mubr.f32.gmra.mxu0 %v102
    %v375 = vpop.f32.mrf.mxu0
    %v376 = vadd.f32 0.0, %v375
    %v377 = vpop.f32.mrf.mxu0
    %v378 = vadd.f32 0.0, %v377
    %379 = vmatprep.mubr.f32.mxu0 0.0
    %380 = vmatmul.mubr.f32.gmra.mxu0 %v105
    %v381 = vpop.f32.mrf.mxu0
    %v382 = vadd.f32 0.0, %v381
    %v383 = vpop.f32.mrf.mxu0
    %v384 = vadd.f32 0.0, %v383
    %385 = vmatprep.mubr.f32.mxu0 0.0
    %386 = vmatmul.mubr.f32.gmra.mxu0 %v108
    %v387 = vpop.f32.mrf.mxu0
    %v388 = vadd.f32 0.0, %v387
    %v389 = vpop.f32.mrf.mxu0
    %v390 = vadd.f32 0.0, %v389
    %391 = vmatprep.mubr.f32.mxu0 0.0
    %392 = vmatmul.mubr.f32.gmra.mxu0 %v111
    %v393 = vpop.f32.mrf.mxu0
    %v394 = vadd.f32 0.0, %v393
    %v395 = vpop.f32.mrf.mxu0
    %v396 = vadd.f32 0.0, %v395
    %397 = vmatprep.mubr.f32.mxu0 0.0
    %398 = vmatmul.mubr.f32.gmra.mxu0 %v114
    %v399 = vpop.f32.mrf.mxu0
    %v400 = vadd.f32 0.0, %v399
    %v401 = vpop.f32.mrf.mxu0
    %v402 = vadd.f32 0.0, %v401
    %403 = vmatprep.mubr.f32.mxu0 0.0
    %404 = vmatmul.mubr.f32.gmra.mxu0 %v117
    %v405 = vpop.f32.mrf.mxu0
    %v406 = vadd.f32 0.0, %v405
    %v407 = vpop.f32.mrf.mxu0
    %v408 = vadd.f32 0.0, %v407
    %409 = vmatprep.mubr.f32.mxu0 0.0
    %410 = vmatmul.mubr.f32.gmra.mxu0 %v120
    %v411 = vpop.f32.mrf.mxu0
    %v412 = vadd.f32 0.0, %v411
    %v413 = vpop.f32.mrf.mxu0
    %v414 = vadd.f32 0.0, %v413
    %415 = vmatprep.mubr.f32.mxu0 0.0
    %416 = vmatmul.mubr.f32.gmra.mxu0 %v123
    %v417 = vpop.f32.mrf.mxu0
    %v418 = vadd.f32 0.0, %v417
    %v419 = vpop.f32.mrf.mxu0
    %v420 = vadd.f32 0.0, %v419
    %421 = vmatprep.mubr.f32.mxu0 0.0
    %422 = vmatmul.mubr.f32.gmra.mxu0 %v126
    %v423 = vpop.f32.mrf.mxu0
    %v424 = vadd.f32 0.0, %v423
    %v425 = vpop.f32.mrf.mxu0
    %v426 = vadd.f32 0.0, %v425
    %427 = vmatprep.mubr.f32.mxu0 0.0
    %428 = vmatmul.mubr.f32.gmra.mxu0 %v129
    %v429 = vpop.f32.mrf.mxu0
    %v430 = vadd.f32 0.0, %v429
    %v431 = vpop.f32.mrf.mxu0
    %v432 = vadd.f32 0.0, %v431
    %433 = vdwg.mxu0
    %434 = vmatprep.subr.mxu0 0.0
    %435 = vmatpush1.msra.mxu0 0.0
    %436 = vmatprep.subr.mxu0 0.0
    %437 = vmatpush1.msra.mxu0 0.0
    %438 = vmatprep.subr.mxu0 0.0
    %439 = vmatpush1.msra.mxu0 0.0
    %440 = vmatprep.subr.mxu0 0.0
    %441 = vmatpush1.msra.mxu0 0.0
    %442 = vmatprep.subr.mxu0 0.0
    %443 = vmatpush1.msra.mxu0 0.0
    %444 = vmatprep.subr.mxu0 0.0
    %445 = vmatpush1.msra.mxu0 0.0
    %446 = vmatprep.subr.mxu0 0.0
    %447 = vmatpush1.msra.mxu0 0.0
    %448 = vmatprep.subr.mxu0 0.0
    %449 = vmatpush1.msra.mxu0 0.0
    %450 = vmatprep.subr.mxu0 0.0
    %451 = vmatpush1.msra.mxu0 0.0
    %452 = vmatprep.subr.mxu0 0.0
    %453 = vmatpush1.msra.mxu0 0.0
    %454 = vmatprep.subr.mxu0 0.0
    %455 = vmatpush1.msra.mxu0 0.0
    %456 = vmatprep.subr.mxu0 0.0
    %457 = vmatpush1.msra.mxu0 0.0
    %458 = vmatprep.subr.mxu0 0.0
    %459 = vmatpush1.msra.mxu0 0.0
    %460 = vmatprep.subr.mxu0 0.0
    %461 = vmatpush1.msra.mxu0 0.0
    %462 = vmatprep.subr.mxu0 0.0
    %463 = vmatpush1.msra.mxu0 0.0
    %464 = vmatprep.subr.mxu0 %v142
    %465 = vmatpush1.msra.mxu0 %v140
    %466 = vmatprep.subr.mxu0 0.0
    %467 = vmatpush2.msra.mxu0 0.0
    %468 = vmatprep.subr.mxu0 0.0
    %469 = vmatpush2.msra.mxu0 0.0
    %470 = vmatprep.subr.mxu0 0.0
    %471 = vmatpush2.msra.mxu0 0.0
    %472 = vmatprep.subr.mxu0 0.0
    %473 = vmatpush2.msra.mxu0 0.0
    %474 = vmatprep.subr.mxu0 0.0
    %475 = vmatpush2.msra.mxu0 0.0
    %476 = vmatprep.subr.mxu0 0.0
    %477 = vmatpush2.msra.mxu0 0.0
    %478 = vmatprep.subr.mxu0 0.0
    %479 = vmatpush2.msra.mxu0 0.0
    %480 = vmatprep.subr.mxu0 0.0
    %481 = vmatpush2.msra.mxu0 0.0
    %482 = vmatprep.subr.mxu0 0.0
    %483 = vmatpush2.msra.mxu0 0.0
    %484 = vmatprep.subr.mxu0 0.0
    %485 = vmatpush2.msra.mxu0 0.0
    %486 = vmatprep.subr.mxu0 0.0
    %487 = vmatpush2.msra.mxu0 0.0
    %488 = vmatprep.subr.mxu0 0.0
    %489 = vmatpush2.msra.mxu0 0.0
    %490 = vmatprep.subr.mxu0 0.0
    %491 = vmatpush2.msra.mxu0 0.0
    %492 = vmatprep.subr.mxu0 0.0
    %493 = vmatpush2.msra.mxu0 0.0
    %494 = vmatprep.subr.mxu0 0.0
    %495 = vmatpush2.msra.mxu0 0.0
    %496 = vmatprep.subr.mxu0 0.0
    %497 = vmatpush2.msra.mxu0 0.0
    %498 = vmatprep.mubr.f32.mxu0 0.0
    %499 = vmatmul.mubr.f32.gmra.mxu0 %v93
    %v500 = vpop.f32.mrf.mxu0
    %v501 = vadd.f32 0.0, %v500
    %v502 = vpop.f32.mrf.mxu0
    %v503 = vadd.f32 0.0, %v502
    %504 = vmatprep.mubr.f32.mxu0 0.0
    %505 = vmatmul.mubr.f32.gmra.mxu0 %v96
    %v506 = vpop.f32.mrf.mxu0
    %v507 = vadd.f32 0.0, %v506
    %v508 = vpop.f32.mrf.mxu0
    %v509 = vadd.f32 0.0, %v508
    %510 = vmatprep.mubr.f32.mxu0 0.0
    %511 = vmatmul.mubr.f32.gmra.mxu0 %v99
    %v512 = vpop.f32.mrf.mxu0
    %v513 = vadd.f32 0.0, %v512
    %v514 = vpop.f32.mrf.mxu0
    %v515 = vadd.f32 0.0, %v514
    %516 = vmatprep.mubr.f32.mxu0 0.0
    %517 = vmatmul.mubr.f32.gmra.mxu0 %v102
    %v518 = vpop.f32.mrf.mxu0
    %v519 = vadd.f32 0.0, %v518
    %v520 = vpop.f32.mrf.mxu0
    %v521 = vadd.f32 0.0, %v520
    %522 = vmatprep.mubr.f32.mxu0 0.0
    %523 = vmatmul.mubr.f32.gmra.mxu0 %v105
    %v524 = vpop.f32.mrf.mxu0
    %v525 = vadd.f32 0.0, %v524
    %v526 = vpop.f32.mrf.mxu0
    %v527 = vadd.f32 0.0, %v526
    %528 = vmatprep.mubr.f32.mxu0 0.0
    %529 = vmatmul.mubr.f32.gmra.mxu0 %v108
    %v530 = vpop.f32.mrf.mxu0
    %v531 = vadd.f32 0.0, %v530
    %v532 = vpop.f32.mrf.mxu0
    %v533 = vadd.f32 0.0, %v532
    %534 = vmatprep.mubr.f32.mxu0 0.0
    %535 = vmatmul.mubr.f32.gmra.mxu0 %v111
    %v536 = vpop.f32.mrf.mxu0
    %v537 = vadd.f32 0.0, %v536
    %v538 = vpop.f32.mrf.mxu0
    %v539 = vadd.f32 0.0, %v538
    %540 = vmatprep.mubr.f32.mxu0 0.0
    %541 = vmatmul.mubr.f32.gmra.mxu0 %v114
    %v542 = vpop.f32.mrf.mxu0
    %v543 = vadd.f32 0.0, %v542
    %v544 = vpop.f32.mrf.mxu0
    %v545 = vadd.f32 0.0, %v544
    %546 = vmatprep.mubr.f32.mxu0 0.0
    %547 = vmatmul.mubr.f32.gmra.mxu0 %v117
    %v548 = vpop.f32.mrf.mxu0
    %v549 = vadd.f32 0.0, %v548
    %v550 = vpop.f32.mrf.mxu0
    %v551 = vadd.f32 0.0, %v550
    %552 = vmatprep.mubr.f32.mxu0 0.0
    %553 = vmatmul.mubr.f32.gmra.mxu0 %v120
    %v554 = vpop.f32.mrf.mxu0
    %v555 = vadd.f32 0.0, %v554
    %v556 = vpop.f32.mrf.mxu0
    %v557 = vadd.f32 0.0, %v556
    %558 = vmatprep.mubr.f32.mxu0 0.0
    %559 = vmatmul.mubr.f32.gmra.mxu0 %v123
    %v560 = vpop.f32.mrf.mxu0
    %v561 = vadd.f32 0.0, %v560
    %v562 = vpop.f32.mrf.mxu0
    %v563 = vadd.f32 0.0, %v562
    %564 = vmatprep.mubr.f32.mxu0 0.0
    %565 = vmatmul.mubr.f32.gmra.mxu0 %v126
    %v566 = vpop.f32.mrf.mxu0
    %v567 = vadd.f32 0.0, %v566
    %v568 = vpop.f32.mrf.mxu0
    %v569 = vadd.f32 0.0, %v568
    %570 = vmatprep.mubr.f32.mxu0 0.0
    %571 = vmatmul.mubr.f32.gmra.mxu0 %v129
    %v572 = vpop.f32.mrf.mxu0
    %v573 = vadd.f32 0.0, %v572
    %v574 = vpop.f32.mrf.mxu0
    %v575 = vadd.f32 0.0, %v574
    %576 = vdwg.mxu0
    %577 = vmatprep.subr.mxu0 0.0
    %578 = vmatpush1.msra.mxu0 0.0
    %579 = vmatprep.subr.mxu0 0.0
    %580 = vmatpush1.msra.mxu0 0.0
    %581 = vmatprep.subr.mxu0 0.0
    %582 = vmatpush1.msra.mxu0 0.0
    %583 = vmatprep.subr.mxu0 0.0
    %584 = vmatpush1.msra.mxu0 0.0
    %585 = vmatprep.subr.mxu0 0.0
    %586 = vmatpush1.msra.mxu0 0.0
    %587 = vmatprep.subr.mxu0 0.0
    %588 = vmatpush1.msra.mxu0 0.0
    %589 = vmatprep.subr.mxu0 0.0
    %590 = vmatpush1.msra.mxu0 0.0
    %591 = vmatprep.subr.mxu0 0.0
    %592 = vmatpush1.msra.mxu0 0.0
    %593 = vmatprep.subr.mxu0 0.0
    %594 = vmatpush1.msra.mxu0 0.0
    %595 = vmatprep.subr.mxu0 0.0
    %596 = vmatpush1.msra.mxu0 0.0
    %597 = vmatprep.subr.mxu0 0.0
    %598 = vmatpush1.msra.mxu0 0.0
    %599 = vmatprep.subr.mxu0 0.0
    %600 = vmatpush1.msra.mxu0 0.0
    %601 = vmatprep.subr.mxu0 0.0
    %602 = vmatpush1.msra.mxu0 0.0
    %603 = vmatprep.subr.mxu0 0.0
    %604 = vmatpush1.msra.mxu0 0.0
    %605 = vmatprep.subr.mxu0 0.0
    %606 = vmatpush1.msra.mxu0 0.0
    %607 = vmatprep.subr.mxu0 %v146
    %608 = vmatpush1.msra.mxu0 %v144
    %609 = vmatprep.subr.mxu0 0.0
    %610 = vmatpush2.msra.mxu0 0.0
    %611 = vmatprep.subr.mxu0 0.0
    %612 = vmatpush2.msra.mxu0 0.0
    %613 = vmatprep.subr.mxu0 0.0
    %614 = vmatpush2.msra.mxu0 0.0
    %615 = vmatprep.subr.mxu0 0.0
    %616 = vmatpush2.msra.mxu0 0.0
    %617 = vmatprep.subr.mxu0 0.0
    %618 = vmatpush2.msra.mxu0 0.0
    %619 = vmatprep.subr.mxu0 0.0
    %620 = vmatpush2.msra.mxu0 0.0
    %621 = vmatprep.subr.mxu0 0.0
    %622 = vmatpush2.msra.mxu0 0.0
    %623 = vmatprep.subr.mxu0 0.0
    %624 = vmatpush2.msra.mxu0 0.0
    %625 = vmatprep.subr.mxu0 0.0
    %626 = vmatpush2.msra.mxu0 0.0
    %627 = vmatprep.subr.mxu0 0.0
    %628 = vmatpush2.msra.mxu0 0.0
    %629 = vmatprep.subr.mxu0 0.0
    %630 = vmatpush2.msra.mxu0 0.0
    %631 = vmatprep.subr.mxu0 0.0
    %632 = vmatpush2.msra.mxu0 0.0
    %633 = vmatprep.subr.mxu0 0.0
    %634 = vmatpush2.msra.mxu0 0.0
    %635 = vmatprep.subr.mxu0 0.0
    %636 = vmatpush2.msra.mxu0 0.0
    %637 = vmatprep.subr.mxu0 0.0
    %638 = vmatpush2.msra.mxu0 0.0
    %639 = vmatprep.subr.mxu0 0.0
    %640 = vmatpush2.msra.mxu0 0.0
    %641 = vmatprep.mubr.f32.mxu0 0.0
    %642 = vmatmul.mubr.f32.gmra.mxu0 %v93
    %v643 = vpop.f32.mrf.mxu0
    %v644 = vadd.f32 0.0, %v643
    %v645 = vpop.f32.mrf.mxu0
    %v646 = vadd.f32 0.0, %v645
    %647 = vmatprep.mubr.f32.mxu0 0.0
    %648 = vmatmul.mubr.f32.gmra.mxu0 %v96
    %v649 = vpop.f32.mrf.mxu0
    %v650 = vadd.f32 0.0, %v649
    %v651 = vpop.f32.mrf.mxu0
    %v652 = vadd.f32 0.0, %v651
    %653 = vmatprep.mubr.f32.mxu0 0.0
    %654 = vmatmul.mubr.f32.gmra.mxu0 %v99
    %v655 = vpop.f32.mrf.mxu0
    %v656 = vadd.f32 0.0, %v655
    %v657 = vpop.f32.mrf.mxu0
    %v658 = vadd.f32 0.0, %v657
    %659 = vmatprep.mubr.f32.mxu0 0.0
    %660 = vmatmul.mubr.f32.gmra.mxu0 %v102
    %v661 = vpop.f32.mrf.mxu0
    %v662 = vadd.f32 0.0, %v661
    %v663 = vpop.f32.mrf.mxu0
    %v664 = vadd.f32 0.0, %v663
    %665 = vmatprep.mubr.f32.mxu0 0.0
    %666 = vmatmul.mubr.f32.gmra.mxu0 %v105
    %v667 = vpop.f32.mrf.mxu0
    %v668 = vadd.f32 0.0, %v667
    %v669 = vpop.f32.mrf.mxu0
    %v670 = vadd.f32 0.0, %v669
    %671 = vmatprep.mubr.f32.mxu0 0.0
    %672 = vmatmul.mubr.f32.gmra.mxu0 %v108
    %v673 = vpop.f32.mrf.mxu0
    %v674 = vadd.f32 0.0, %v673
    %v675 = vpop.f32.mrf.mxu0
    %v676 = vadd.f32 0.0, %v675
    %677 = vmatprep.mubr.f32.mxu0 0.0
    %678 = vmatmul.mubr.f32.gmra.mxu0 %v111
    %v679 = vpop.f32.mrf.mxu0
    %v680 = vadd.f32 0.0, %v679
    %v681 = vpop.f32.mrf.mxu0
    %v682 = vadd.f32 0.0, %v681
    %683 = vmatprep.mubr.f32.mxu0 0.0
    %684 = vmatmul.mubr.f32.gmra.mxu0 %v114
    %v685 = vpop.f32.mrf.mxu0
    %v686 = vadd.f32 0.0, %v685
    %v687 = vpop.f32.mrf.mxu0
    %v688 = vadd.f32 0.0, %v687
    %689 = vmatprep.mubr.f32.mxu0 0.0
    %690 = vmatmul.mubr.f32.gmra.mxu0 %v117
    %v691 = vpop.f32.mrf.mxu0
    %v692 = vadd.f32 0.0, %v691
    %v693 = vpop.f32.mrf.mxu0
    %v694 = vadd.f32 0.0, %v693
    %695 = vmatprep.mubr.f32.mxu0 0.0
    %696 = vmatmul.mubr.f32.gmra.mxu0 %v120
    %v697 = vpop.f32.mrf.mxu0
    %v698 = vadd.f32 0.0, %v697
    %v699 = vpop.f32.mrf.mxu0
    %v700 = vadd.f32 0.0, %v699
    %701 = vmatprep.mubr.f32.mxu0 0.0
    %702 = vmatmul.mubr.f32.gmra.mxu0 %v123
    %v703 = vpop.f32.mrf.mxu0
    %v704 = vadd.f32 0.0, %v703
    %v705 = vpop.f32.mrf.mxu0
    %v706 = vadd.f32 0.0, %v705
    %707 = vmatprep.mubr.f32.mxu0 0.0
    %708 = vmatmul.mubr.f32.gmra.mxu0 %v126
    %v709 = vpop.f32.mrf.mxu0
    %v710 = vadd.f32 0.0, %v709
    %v711 = vpop.f32.mrf.mxu0
    %v712 = vadd.f32 0.0, %v711
    %713 = vmatprep.mubr.f32.mxu0 0.0
    %714 = vmatmul.mubr.f32.gmra.mxu0 %v129
    %v715 = vpop.f32.mrf.mxu0
    %v716 = vadd.f32 0.0, %v715
    %v717 = vpop.f32.mrf.mxu0
    %v718 = vadd.f32 0.0, %v717
    %719 = vdwg.mxu0
    %v720 = vmax.f32 %v215, 0.0
    %v721 = vmax.f32 %v217, 0.0
    %v722 = vmax.f32 %v358, 0.0
    %v723 = vmax.f32 %v360, 0.0
    %v724 = vmax.f32 %v501, 0.0
    %v725 = vmax.f32 %v503, 0.0
    %v726 = vmax.f32 %v644, 0.0
    %v727 = vmax.f32 %v646, 0.0
    %v728 = vmax.f32 %v221, 0.0
    %v729 = vmax.f32 %v223, 0.0
    %v730 = vmax.f32 %v364, 0.0
    %v731 = vmax.f32 %v366, 0.0
    %v732 = vmax.f32 %v507, 0.0
    %v733 = vmax.f32 %v509, 0.0
    %v734 = vmax.f32 %v650, 0.0
    %v735 = vmax.f32 %v652, 0.0
    %v736 = vmax.f32 %v227, 0.0
    %v737 = vmax.f32 %v229, 0.0
    %v738 = vmax.f32 %v370, 0.0
    %v739 = vmax.f32 %v372, 0.0
    %v740 = vmax.f32 %v513, 0.0
    %v741 = vmax.f32 %v515, 0.0
    %v742 = vmax.f32 %v656, 0.0
    %v743 = vmax.f32 %v658, 0.0
    %v744 = vmax.f32 %v233, 0.0
    %v745 = vmax.f32 %v235, 0.0
    %v746 = vmax.f32 %v376, 0.0
    %v747 = vmax.f32 %v378, 0.0
    %v748 = vmax.f32 %v519, 0.0
    %v749 = vmax.f32 %v521, 0.0
    %v750 = vmax.f32 %v662, 0.0
    %v751 = vmax.f32 %v664, 0.0
    %v752 = vld [vmem:[%s2] sm:$0xff]
    %v753 = vld [vmem:[%s2 + $0x8] sm:$0xff]
    %v754 = vld [vmem:[%s2 + $0x10] sm:$0xff]
    %v755 = vld [vmem:[%s2 + $0x18] sm:$0xff]
    %vm756 = vcmask 261120
    %v758 = vsel %vm756, %v752, 0
    %v761 = vsel %vm756, %v753, 0
    %v764 = vsel %vm756, %v754, 0
    %v767 = vsel %vm756, %v755, 0
    %769 = vmatprep.subr.mxu0 0.0
    %770 = vmatpush1.msra.mxu0 0.0
    %771 = vmatprep.subr.mxu0 0.0
    %772 = vmatpush1.msra.mxu0 0.0
    %773 = vmatprep.subr.mxu0 0.0
    %774 = vmatpush1.msra.mxu0 0.0
    %775 = vmatprep.subr.mxu0 0.0
    %776 = vmatpush1.msra.mxu0 0.0
    %777 = vmatprep.subr.mxu0 0.0
    %778 = vmatpush1.msra.mxu0 0.0
    %779 = vmatprep.subr.mxu0 0.0
    %780 = vmatpush1.msra.mxu0 0.0
    %781 = vmatprep.subr.mxu0 0.0
    %782 = vmatpush1.msra.mxu0 0.0
    %783 = vmatprep.subr.mxu0 0.0
    %784 = vmatpush1.msra.mxu0 0.0
    %785 = vmatprep.subr.mxu0 0.0
    %786 = vmatpush1.msra.mxu0 0.0
    %787 = vmatprep.subr.mxu0 0.0
    %788 = vmatpush1.msra.mxu0 0.0
    %789 = vmatprep.subr.mxu0 0.0
    %790 = vmatpush1.msra.mxu0 0.0
    %791 = vmatprep.subr.mxu0 0.0
    %792 = vmatpush1.msra.mxu0 0.0
    %793 = vmatprep.subr.mxu0 %v745
    %794 = vmatpush1.msra.mxu0 %v744
    %795 = vmatprep.subr.mxu0 %v737
    %796 = vmatpush1.msra.mxu0 %v736
    %797 = vmatprep.subr.mxu0 %v729
    %798 = vmatpush1.msra.mxu0 %v728
    %799 = vmatprep.subr.mxu0 %v721
    %800 = vmatpush1.msra.mxu0 %v720
    %801 = vmatprep.subr.mxu0 0.0
    %802 = vmatpush2.msra.mxu0 0.0
    %803 = vmatprep.subr.mxu0 0.0
    %804 = vmatpush2.msra.mxu0 0.0
    %805 = vmatprep.subr.mxu0 0.0
    %806 = vmatpush2.msra.mxu0 0.0
    %807 = vmatprep.subr.mxu0 0.0
    %808 = vmatpush2.msra.mxu0 0.0
    %809 = vmatprep.subr.mxu0 0.0
    %810 = vmatpush2.msra.mxu0 0.0
    %811 = vmatprep.subr.mxu0 0.0
    %812 = vmatpush2.msra.mxu0 0.0
    %813 = vmatprep.subr.mxu0 0.0
    %814 = vmatpush2.msra.mxu0 0.0
    %815 = vmatprep.subr.mxu0 0.0
    %816 = vmatpush2.msra.mxu0 0.0
    %817 = vmatprep.subr.mxu0 0.0
    %818 = vmatpush2.msra.mxu0 0.0
    %819 = vmatprep.subr.mxu0 0.0
    %820 = vmatpush2.msra.mxu0 0.0
    %821 = vmatprep.subr.mxu0 0.0
    %822 = vmatpush2.msra.mxu0 0.0
    %823 = vmatprep.subr.mxu0 0.0
    %824 = vmatpush2.msra.mxu0 0.0
    %825 = vmatprep.subr.mxu0 0.0
    %826 = vmatpush2.msra.mxu0 0.0
    %827 = vmatprep.subr.mxu0 0.0
    %828 = vmatpush2.msra.mxu0 0.0
    %829 = vmatprep.subr.mxu0 0.0
    %830 = vmatpush2.msra.mxu0 0.0
    %831 = vmatprep.subr.mxu0 0.0
    %832 = vmatpush2.msra.mxu0 0.0
    %833 = vmatprep.mubr.f32.mxu0 0.0
    %834 = vmatmul.mubr.f32.gmra.mxu0 %v758
    %v835 = vpop.f32.mrf.mxu0
    %v836 = vadd.f32 %v239, %v835
    %v837 = vpop.f32.mrf.mxu0
    %v838 = vadd.f32 %v241, %v837
    %839 = vmatprep.mubr.f32.mxu0 0.0
    %840 = vmatmul.mubr.f32.gmra.mxu0 %v761
    %v841 = vpop.f32.mrf.mxu0
    %v842 = vadd.f32 %v245, %v841
    %v843 = vpop.f32.mrf.mxu0
    %v844 = vadd.f32 %v247, %v843
    %845 = vmatprep.mubr.f32.mxu0 0.0
    %846 = vmatmul.mubr.f32.gmra.mxu0 %v764
    %v847 = vpop.f32.mrf.mxu0
    %v848 = vadd.f32 %v251, %v847
    %v849 = vpop.f32.mrf.mxu0
    %v850 = vadd.f32 %v253, %v849
    %851 = vmatprep.mubr.f32.mxu0 0.0
    %852 = vmatmul.mubr.f32.gmra.mxu0 %v767
    %v853 = vpop.f32.mrf.mxu0
    %v854 = vadd.f32 %v257, %v853
    %v855 = vpop.f32.mrf.mxu0
    %v856 = vadd.f32 %v259, %v855
    %857 = vdwg.mxu0
    %858 = vmatprep.subr.mxu0 0.0
    %859 = vmatpush1.msra.mxu0 0.0
    %860 = vmatprep.subr.mxu0 0.0
    %861 = vmatpush1.msra.mxu0 0.0
    %862 = vmatprep.subr.mxu0 0.0
    %863 = vmatpush1.msra.mxu0 0.0
    %864 = vmatprep.subr.mxu0 0.0
    %865 = vmatpush1.msra.mxu0 0.0
    %866 = vmatprep.subr.mxu0 0.0
    %867 = vmatpush1.msra.mxu0 0.0
    %868 = vmatprep.subr.mxu0 0.0
    %869 = vmatpush1.msra.mxu0 0.0
    %870 = vmatprep.subr.mxu0 0.0
    %871 = vmatpush1.msra.mxu0 0.0
    %872 = vmatprep.subr.mxu0 0.0
    %873 = vmatpush1.msra.mxu0 0.0
    %874 = vmatprep.subr.mxu0 0.0
    %875 = vmatpush1.msra.mxu0 0.0
    %876 = vmatprep.subr.mxu0 0.0
    %877 = vmatpush1.msra.mxu0 0.0
    %878 = vmatprep.subr.mxu0 0.0
    %879 = vmatpush1.msra.mxu0 0.0
    %880 = vmatprep.subr.mxu0 0.0
    %881 = vmatpush1.msra.mxu0 0.0
    %882 = vmatprep.subr.mxu0 %v747
    %883 = vmatpush1.msra.mxu0 %v746
    %884 = vmatprep.subr.mxu0 %v739
    %885 = vmatpush1.msra.mxu0 %v738
    %886 = vmatprep.subr.mxu0 %v731
    %887 = vmatpush1.msra.mxu0 %v730
    %888 = vmatprep.subr.mxu0 %v723
    %889 = vmatpush1.msra.mxu0 %v722
    %890 = vmatprep.subr.mxu0 0.0
    %891 = vmatpush2.msra.mxu0 0.0
    %892 = vmatprep.subr.mxu0 0.0
    %893 = vmatpush2.msra.mxu0 0.0
    %894 = vmatprep.subr.mxu0 0.0
    %895 = vmatpush2.msra.mxu0 0.0
    %896 = vmatprep.subr.mxu0 0.0
    %897 = vmatpush2.msra.mxu0 0.0
    %898 = vmatprep.subr.mxu0 0.0
    %899 = vmatpush2.msra.mxu0 0.0
    %900 = vmatprep.subr.mxu0 0.0
    %901 = vmatpush2.msra.mxu0 0.0
    %902 = vmatprep.subr.mxu0 0.0
    %903 = vmatpush2.msra.mxu0 0.0
    %904 = vmatprep.subr.mxu0 0.0
    %905 = vmatpush2.msra.mxu0 0.0
    %906 = vmatprep.subr.mxu0 0.0
    %907 = vmatpush2.msra.mxu0 0.0
    %908 = vmatprep.subr.mxu0 0.0
    %909 = vmatpush2.msra.mxu0 0.0
    %910 = vmatprep.subr.mxu0 0.0
    %911 = vmatpush2.msra.mxu0 0.0
    %912 = vmatprep.subr.mxu0 0.0
    %913 = vmatpush2.msra.mxu0 0.0
    %914 = vmatprep.subr.mxu0 0.0
    %915 = vmatpush2.msra.mxu0 0.0
    %916 = vmatprep.subr.mxu0 0.0
    %917 = vmatpush2.msra.mxu0 0.0
    %918 = vmatprep.subr.mxu0 0.0
    %919 = vmatpush2.msra.mxu0 0.0
    %920 = vmatprep.subr.mxu0 0.0
    %921 = vmatpush2.msra.mxu0 0.0
    %922 = vmatprep.mubr.f32.mxu0 0.0
    %923 = vmatmul.mubr.f32.gmra.mxu0 %v758
    %v924 = vpop.f32.mrf.mxu0
    %v925 = vadd.f32 %v382, %v924
    %v926 = vpop.f32.mrf.mxu0
    %v927 = vadd.f32 %v384, %v926
    %928 = vmatprep.mubr.f32.mxu0 0.0
    %929 = vmatmul.mubr.f32.gmra.mxu0 %v761
    %v930 = vpop.f32.mrf.mxu0
    %v931 = vadd.f32 %v388, %v930
    %v932 = vpop.f32.mrf.mxu0
    %v933 = vadd.f32 %v390, %v932
    %934 = vmatprep.mubr.f32.mxu0 0.0
    %935 = vmatmul.mubr.f32.gmra.mxu0 %v764
    %v936 = vpop.f32.mrf.mxu0
    %v937 = vadd.f32 %v394, %v936
    %v938 = vpop.f32.mrf.mxu0
    %v939 = vadd.f32 %v396, %v938
    %940 = vmatprep.mubr.f32.mxu0 0.0
    %941 = vmatmul.mubr.f32.gmra.mxu0 %v767
    %v942 = vpop.f32.mrf.mxu0
    %v943 = vadd.f32 %v400, %v942
    %v944 = vpop.f32.mrf.mxu0
    %v945 = vadd.f32 %v402, %v944
    %946 = vdwg.mxu0
    %947 = vmatprep.subr.mxu0 0.0
    %948 = vmatpush1.msra.mxu0 0.0
    %949 = vmatprep.subr.mxu0 0.0
    %950 = vmatpush1.msra.mxu0 0.0
    %951 = vmatprep.subr.mxu0 0.0
    %952 = vmatpush1.msra.mxu0 0.0
    %953 = vmatprep.subr.mxu0 0.0
    %954 = vmatpush1.msra.mxu0 0.0
    %955 = vmatprep.subr.mxu0 0.0
    %956 = vmatpush1.msra.mxu0 0.0
    %957 = vmatprep.subr.mxu0 0.0
    %958 = vmatpush1.msra.mxu0 0.0
    %959 = vmatprep.subr.mxu0 0.0
    %960 = vmatpush1.msra.mxu0 0.0
    %961 = vmatprep.subr.mxu0 0.0
    %962 = vmatpush1.msra.mxu0 0.0
    %963 = vmatprep.subr.mxu0 0.0
    %964 = vmatpush1.msra.mxu0 0.0
    %965 = vmatprep.subr.mxu0 0.0
    %966 = vmatpush1.msra.mxu0 0.0
    %967 = vmatprep.subr.mxu0 0.0
    %968 = vmatpush1.msra.mxu0 0.0
    %969 = vmatprep.subr.mxu0 0.0
    %970 = vmatpush1.msra.mxu0 0.0
    %971 = vmatprep.subr.mxu0 %v749
    %972 = vmatpush1.msra.mxu0 %v748
    %973 = vmatprep.subr.mxu0 %v741
    %974 = vmatpush1.msra.mxu0 %v740
    %975 = vmatprep.subr.mxu0 %v733
    %976 = vmatpush1.msra.mxu0 %v732
    %977 = vmatprep.subr.mxu0 %v725
    %978 = vmatpush1.msra.mxu0 %v724
    %979 = vmatprep.subr.mxu0 0.0
    %980 = vmatpush2.msra.mxu0 0.0
    %981 = vmatprep.subr.mxu0 0.0
    %982 = vmatpush2.msra.mxu0 0.0
    %983 = vmatprep.subr.mxu0 0.0
    %984 = vmatpush2.msra.mxu0 0.0
    %985 = vmatprep.subr.mxu0 0.0
    %986 = vmatpush2.msra.mxu0 0.0
    %987 = vmatprep.subr.mxu0 0.0
    %988 = vmatpush2.msra.mxu0 0.0
    %989 = vmatprep.subr.mxu0 0.0
    %990 = vmatpush2.msra.mxu0 0.0
    %991 = vmatprep.subr.mxu0 0.0
    %992 = vmatpush2.msra.mxu0 0.0
    %993 = vmatprep.subr.mxu0 0.0
    %994 = vmatpush2.msra.mxu0 0.0
    %995 = vmatprep.subr.mxu0 0.0
    %996 = vmatpush2.msra.mxu0 0.0
    %997 = vmatprep.subr.mxu0 0.0
    %998 = vmatpush2.msra.mxu0 0.0
    %999 = vmatprep.subr.mxu0 0.0
    %1000 = vmatpush2.msra.mxu0 0.0
    %1001 = vmatprep.subr.mxu0 0.0
    %1002 = vmatpush2.msra.mxu0 0.0
    %1003 = vmatprep.subr.mxu0 0.0
    %1004 = vmatpush2.msra.mxu0 0.0
    %1005 = vmatprep.subr.mxu0 0.0
    %1006 = vmatpush2.msra.mxu0 0.0
    %1007 = vmatprep.subr.mxu0 0.0
    %1008 = vmatpush2.msra.mxu0 0.0
    %1009 = vmatprep.subr.mxu0 0.0
    %1010 = vmatpush2.msra.mxu0 0.0
    %1011 = vmatprep.mubr.f32.mxu0 0.0
    %1012 = vmatmul.mubr.f32.gmra.mxu0 %v758
    %v1013 = vpop.f32.mrf.mxu0
    %v1014 = vadd.f32 %v525, %v1013
    %v1015 = vpop.f32.mrf.mxu0
    %v1016 = vadd.f32 %v527, %v1015
    %1017 = vmatprep.mubr.f32.mxu0 0.0
    %1018 = vmatmul.mubr.f32.gmra.mxu0 %v761
    %v1019 = vpop.f32.mrf.mxu0
    %v1020 = vadd.f32 %v531, %v1019
    %v1021 = vpop.f32.mrf.mxu0
    %v1022 = vadd.f32 %v533, %v1021
    %1023 = vmatprep.mubr.f32.mxu0 0.0
    %1024 = vmatmul.mubr.f32.gmra.mxu0 %v764
    %v1025 = vpop.f32.mrf.mxu0
    %v1026 = vadd.f32 %v537, %v1025
    %v1027 = vpop.f32.mrf.mxu0
    %v1028 = vadd.f32 %v539, %v1027
    %1029 = vmatprep.mubr.f32.mxu0 0.0
    %1030 = vmatmul.mubr.f32.gmra.mxu0 %v767
    %v1031 = vpop.f32.mrf.mxu0
    %v1032 = vadd.f32 %v543, %v1031
    %v1033 = vpop.f32.mrf.mxu0
    %v1034 = vadd.f32 %v545, %v1033
    %1035 = vdwg.mxu0
    %1036 = vmatprep.subr.mxu0 0.0
    %1037 = vmatpush1.msra.mxu0 0.0
    %1038 = vmatprep.subr.mxu0 0.0
    %1039 = vmatpush1.msra.mxu0 0.0
    %1040 = vmatprep.subr.mxu0 0.0
    %1041 = vmatpush1.msra.mxu0 0.0
    %1042 = vmatprep.subr.mxu0 0.0
    %1043 = vmatpush1.msra.mxu0 0.0
    %1044 = vmatprep.subr.mxu0 0.0
    %1045 = vmatpush1.msra.mxu0 0.0
    %1046 = vmatprep.subr.mxu0 0.0
    %1047 = vmatpush1.msra.mxu0 0.0
    %1048 = vmatprep.subr.mxu0 0.0
    %1049 = vmatpush1.msra.mxu0 0.0
    %1050 = vmatprep.subr.mxu0 0.0
    %1051 = vmatpush1.msra.mxu0 0.0
    %1052 = vmatprep.subr.mxu0 0.0
    %1053 = vmatpush1.msra.mxu0 0.0
    %1054 = vmatprep.subr.mxu0 0.0
    %1055 = vmatpush1.msra.mxu0 0.0
    %1056 = vmatprep.subr.mxu0 0.0
    %1057 = vmatpush1.msra.mxu0 0.0
    %1058 = vmatprep.subr.mxu0 0.0
    %1059 = vmatpush1.msra.mxu0 0.0
    %1060 = vmatprep.subr.mxu0 %v751
    %1061 = vmatpush1.msra.mxu0 %v750
    %1062 = vmatprep.subr.mxu0 %v743
    %1063 = vmatpush1.msra.mxu0 %v742
    %1064 = vmatprep.subr.mxu0 %v735
    %1065 = vmatpush1.msra.mxu0 %v734
    %1066 = vmatprep.subr.mxu0 %v727
    %1067 = vmatpush1.msra.mxu0 %v726
    %1068 = vmatprep.subr.mxu0 0.0
    %1069 = vmatpush2.msra.mxu0 0.0
    %1070 = vmatprep.subr.mxu0 0.0
    %1071 = vmatpush2.msra.mxu0 0.0
    %1072 = vmatprep.subr.mxu0 0.0
    %1073 = vmatpush2.msra.mxu0 0.0
    %1074 = vmatprep.subr.mxu0 0.0
    %1075 = vmatpush2.msra.mxu0 0.0
    %1076 = vmatprep.subr.mxu0 0.0
    %1077 = vmatpush2.msra.mxu0 0.0
    %1078 = vmatprep.subr.mxu0 0.0
    %1079 = vmatpush2.msra.mxu0 0.0
    %1080 = vmatprep.subr.mxu0 0.0
    %1081 = vmatpush2.msra.mxu0 0.0
    %1082 = vmatprep.subr.mxu0 0.0
    %1083 = vmatpush2.msra.mxu0 0.0
    %1084 = vmatprep.subr.mxu0 0.0
    %1085 = vmatpush2.msra.mxu0 0.0
    %1086 = vmatprep.subr.mxu0 0.0
    %1087 = vmatpush2.msra.mxu0 0.0
    %1088 = vmatprep.subr.mxu0 0.0
    %1089 = vmatpush2.msra.mxu0 0.0
    %1090 = vmatprep.subr.mxu0 0.0
    %1091 = vmatpush2.msra.mxu0 0.0
    %1092 = vmatprep.subr.mxu0 0.0
    %1093 = vmatpush2.msra.mxu0 0.0
    %1094 = vmatprep.subr.mxu0 0.0
    %1095 = vmatpush2.msra.mxu0 0.0
    %1096 = vmatprep.subr.mxu0 0.0
    %1097 = vmatpush2.msra.mxu0 0.0
    %1098 = vmatprep.subr.mxu0 0.0
    %1099 = vmatpush2.msra.mxu0 0.0
    %1100 = vmatprep.mubr.f32.mxu0 0.0
    %1101 = vmatmul.mubr.f32.gmra.mxu0 %v758
    %v1102 = vpop.f32.mrf.mxu0
    %v1103 = vadd.f32 %v668, %v1102
    %v1104 = vpop.f32.mrf.mxu0
    %v1105 = vadd.f32 %v670, %v1104
    %1106 = vmatprep.mubr.f32.mxu0 0.0
    %1107 = vmatmul.mubr.f32.gmra.mxu0 %v761
    %v1108 = vpop.f32.mrf.mxu0
    %v1109 = vadd.f32 %v674, %v1108
    %v1110 = vpop.f32.mrf.mxu0
    %v1111 = vadd.f32 %v676, %v1110
    %1112 = vmatprep.mubr.f32.mxu0 0.0
    %1113 = vmatmul.mubr.f32.gmra.mxu0 %v764
    %v1114 = vpop.f32.mrf.mxu0
    %v1115 = vadd.f32 %v680, %v1114
    %v1116 = vpop.f32.mrf.mxu0
    %v1117 = vadd.f32 %v682, %v1116
    %1118 = vmatprep.mubr.f32.mxu0 0.0
    %1119 = vmatmul.mubr.f32.gmra.mxu0 %v767
    %v1120 = vpop.f32.mrf.mxu0
    %v1121 = vadd.f32 %v686, %v1120
    %v1122 = vpop.f32.mrf.mxu0
    %v1123 = vadd.f32 %v688, %v1122
    %1124 = vdwg.mxu0
    %v1125 = vmax.f32 %v836, 0.0
    %v1126 = vmax.f32 %v838, 0.0
    %v1127 = vmax.f32 %v925, 0.0
    %v1128 = vmax.f32 %v927, 0.0
    %v1129 = vmax.f32 %v1014, 0.0
    %v1130 = vmax.f32 %v1016, 0.0
    %v1131 = vmax.f32 %v1103, 0.0
    %v1132 = vmax.f32 %v1105, 0.0
    %v1133 = vmax.f32 %v842, 0.0
    %v1134 = vmax.f32 %v844, 0.0
    %v1135 = vmax.f32 %v931, 0.0
    %v1136 = vmax.f32 %v933, 0.0
    %v1137 = vmax.f32 %v1020, 0.0
    %v1138 = vmax.f32 %v1022, 0.0
    %v1139 = vmax.f32 %v1109, 0.0
    %v1140 = vmax.f32 %v1111, 0.0
    %v1141 = vmax.f32 %v848, 0.0
    %v1142 = vmax.f32 %v850, 0.0
    %v1143 = vmax.f32 %v937, 0.0
    %v1144 = vmax.f32 %v939, 0.0
    %v1145 = vmax.f32 %v1026, 0.0
    %v1146 = vmax.f32 %v1028, 0.0
    %v1147 = vmax.f32 %v1115, 0.0
    %v1148 = vmax.f32 %v1117, 0.0
    %v1149 = vmax.f32 %v854, 0.0
    %v1150 = vmax.f32 %v856, 0.0
    %v1151 = vmax.f32 %v943, 0.0
    %v1152 = vmax.f32 %v945, 0.0
    %v1153 = vmax.f32 %v1032, 0.0
    %v1154 = vmax.f32 %v1034, 0.0
    %v1155 = vmax.f32 %v1121, 0.0
    %v1156 = vmax.f32 %v1123, 0.0
    %v1157 = vld [vmem:[%s2 + $0x20] sm:$0xff]
    %v1158 = vld [vmem:[%s2 + $0x28] sm:$0xff]
    %v1159 = vld [vmem:[%s2 + $0x30] sm:$0xff]
    %v1160 = vld [vmem:[%s2 + $0x38] sm:$0xff]
    %v1162 = vsel %vm756, %v1157, 0
    %v1165 = vsel %vm756, %v1158, 0
    %v1168 = vsel %vm756, %v1159, 0
    %v1171 = vsel %vm756, %v1160, 0
    %1173 = vmatprep.subr.mxu0 0.0
    %1174 = vmatpush1.msra.mxu0 0.0
    %1175 = vmatprep.subr.mxu0 0.0
    %1176 = vmatpush1.msra.mxu0 0.0
    %1177 = vmatprep.subr.mxu0 0.0
    %1178 = vmatpush1.msra.mxu0 0.0
    %1179 = vmatprep.subr.mxu0 0.0
    %1180 = vmatpush1.msra.mxu0 0.0
    %1181 = vmatprep.subr.mxu0 0.0
    %1182 = vmatpush1.msra.mxu0 0.0
    %1183 = vmatprep.subr.mxu0 0.0
    %1184 = vmatpush1.msra.mxu0 0.0
    %1185 = vmatprep.subr.mxu0 0.0
    %1186 = vmatpush1.msra.mxu0 0.0
    %1187 = vmatprep.subr.mxu0 0.0
    %1188 = vmatpush1.msra.mxu0 0.0
    %1189 = vmatprep.subr.mxu0 0.0
    %1190 = vmatpush1.msra.mxu0 0.0
    %1191 = vmatprep.subr.mxu0 0.0
    %1192 = vmatpush1.msra.mxu0 0.0
    %1193 = vmatprep.subr.mxu0 0.0
    %1194 = vmatpush1.msra.mxu0 0.0
    %1195 = vmatprep.subr.mxu0 0.0
    %1196 = vmatpush1.msra.mxu0 0.0
    %1197 = vmatprep.subr.mxu0 %v1150
    %1198 = vmatpush1.msra.mxu0 %v1149
    %1199 = vmatprep.subr.mxu0 %v1142
    %1200 = vmatpush1.msra.mxu0 %v1141
    %1201 = vmatprep.subr.mxu0 %v1134
    %1202 = vmatpush1.msra.mxu0 %v1133
    %1203 = vmatprep.subr.mxu0 %v1126
    %1204 = vmatpush1.msra.mxu0 %v1125
    %1205 = vmatprep.subr.mxu0 0.0
    %1206 = vmatpush2.msra.mxu0 0.0
    %1207 = vmatprep.subr.mxu0 0.0
    %1208 = vmatpush2.msra.mxu0 0.0
    %1209 = vmatprep.subr.mxu0 0.0
    %1210 = vmatpush2.msra.mxu0 0.0
    %1211 = vmatprep.subr.mxu0 0.0
    %1212 = vmatpush2.msra.mxu0 0.0
    %1213 = vmatprep.subr.mxu0 0.0
    %1214 = vmatpush2.msra.mxu0 0.0
    %1215 = vmatprep.subr.mxu0 0.0
    %1216 = vmatpush2.msra.mxu0 0.0
    %1217 = vmatprep.subr.mxu0 0.0
    %1218 = vmatpush2.msra.mxu0 0.0
    %1219 = vmatprep.subr.mxu0 0.0
    %1220 = vmatpush2.msra.mxu0 0.0
    %1221 = vmatprep.subr.mxu0 0.0
    %1222 = vmatpush2.msra.mxu0 0.0
    %1223 = vmatprep.subr.mxu0 0.0
    %1224 = vmatpush2.msra.mxu0 0.0
    %1225 = vmatprep.subr.mxu0 0.0
    %1226 = vmatpush2.msra.mxu0 0.0
    %1227 = vmatprep.subr.mxu0 0.0
    %1228 = vmatpush2.msra.mxu0 0.0
    %1229 = vmatprep.subr.mxu0 0.0
    %1230 = vmatpush2.msra.mxu0 0.0
    %1231 = vmatprep.subr.mxu0 0.0
    %1232 = vmatpush2.msra.mxu0 0.0
    %1233 = vmatprep.subr.mxu0 0.0
    %1234 = vmatpush2.msra.mxu0 0.0
    %1235 = vmatprep.subr.mxu0 0.0
    %1236 = vmatpush2.msra.mxu0 0.0
    %1237 = vmatprep.mubr.f32.mxu0 0.0
    %1238 = vmatmul.mubr.f32.gmra.mxu0 %v1162
    %v1239 = vpop.f32.mrf.mxu0
    %v1240 = vadd.f32 %v263, %v1239
    %v1241 = vpop.f32.mrf.mxu0
    %v1242 = vadd.f32 %v265, %v1241
    %1243 = vmatprep.mubr.f32.mxu0 0.0
    %1244 = vmatmul.mubr.f32.gmra.mxu0 %v1165
    %v1245 = vpop.f32.mrf.mxu0
    %v1246 = vadd.f32 %v269, %v1245
    %v1247 = vpop.f32.mrf.mxu0
    %v1248 = vadd.f32 %v271, %v1247
    %1249 = vmatprep.mubr.f32.mxu0 0.0
    %1250 = vmatmul.mubr.f32.gmra.mxu0 %v1168
    %v1251 = vpop.f32.mrf.mxu0
    %v1252 = vadd.f32 %v275, %v1251
    %v1253 = vpop.f32.mrf.mxu0
    %v1254 = vadd.f32 %v277, %v1253
    %1255 = vmatprep.mubr.f32.mxu0 0.0
    %1256 = vmatmul.mubr.f32.gmra.mxu0 %v1171
    %v1257 = vpop.f32.mrf.mxu0
    %v1258 = vadd.f32 %v281, %v1257
    %v1259 = vpop.f32.mrf.mxu0
    %v1260 = vadd.f32 %v283, %v1259
    %1261 = vdwg.mxu0
    %1262 = vmatprep.subr.mxu0 0.0
    %1263 = vmatpush1.msra.mxu0 0.0
    %1264 = vmatprep.subr.mxu0 0.0
    %1265 = vmatpush1.msra.mxu0 0.0
    %1266 = vmatprep.subr.mxu0 0.0
    %1267 = vmatpush1.msra.mxu0 0.0
    %1268 = vmatprep.subr.mxu0 0.0
    %1269 = vmatpush1.msra.mxu0 0.0
    %1270 = vmatprep.subr.mxu0 0.0
    %1271 = vmatpush1.msra.mxu0 0.0
    %1272 = vmatprep.subr.mxu0 0.0
    %1273 = vmatpush1.msra.mxu0 0.0
    %1274 = vmatprep.subr.mxu0 0.0
    %1275 = vmatpush1.msra.mxu0 0.0
    %1276 = vmatprep.subr.mxu0 0.0
    %1277 = vmatpush1.msra.mxu0 0.0
    %1278 = vmatprep.subr.mxu0 0.0
    %1279 = vmatpush1.msra.mxu0 0.0
    %1280 = vmatprep.subr.mxu0 0.0
    %1281 = vmatpush1.msra.mxu0 0.0
    %1282 = vmatprep.subr.mxu0 0.0
    %1283 = vmatpush1.msra.mxu0 0.0
    %1284 = vmatprep.subr.mxu0 0.0
    %1285 = vmatpush1.msra.mxu0 0.0
    %1286 = vmatprep.subr.mxu0 %v1152
    %1287 = vmatpush1.msra.mxu0 %v1151
    %1288 = vmatprep.subr.mxu0 %v1144
    %1289 = vmatpush1.msra.mxu0 %v1143
    %1290 = vmatprep.subr.mxu0 %v1136
    %1291 = vmatpush1.msra.mxu0 %v1135
    %1292 = vmatprep.subr.mxu0 %v1128
    %1293 = vmatpush1.msra.mxu0 %v1127
    %1294 = vmatprep.subr.mxu0 0.0
    %1295 = vmatpush2.msra.mxu0 0.0
    %1296 = vmatprep.subr.mxu0 0.0
    %1297 = vmatpush2.msra.mxu0 0.0
    %1298 = vmatprep.subr.mxu0 0.0
    %1299 = vmatpush2.msra.mxu0 0.0
    %1300 = vmatprep.subr.mxu0 0.0
    %1301 = vmatpush2.msra.mxu0 0.0
    %1302 = vmatprep.subr.mxu0 0.0
    %1303 = vmatpush2.msra.mxu0 0.0
    %1304 = vmatprep.subr.mxu0 0.0
    %1305 = vmatpush2.msra.mxu0 0.0
    %1306 = vmatprep.subr.mxu0 0.0
    %1307 = vmatpush2.msra.mxu0 0.0
    %1308 = vmatprep.subr.mxu0 0.0
    %1309 = vmatpush2.msra.mxu0 0.0
    %1310 = vmatprep.subr.mxu0 0.0
    %1311 = vmatpush2.msra.mxu0 0.0
    %1312 = vmatprep.subr.mxu0 0.0
    %1313 = vmatpush2.msra.mxu0 0.0
    %1314 = vmatprep.subr.mxu0 0.0
    %1315 = vmatpush2.msra.mxu0 0.0
    %1316 = vmatprep.subr.mxu0 0.0
    %1317 = vmatpush2.msra.mxu0 0.0
    %1318 = vmatprep.subr.mxu0 0.0
    %1319 = vmatpush2.msra.mxu0 0.0
    %1320 = vmatprep.subr.mxu0 0.0
    %1321 = vmatpush2.msra.mxu0 0.0
    %1322 = vmatprep.subr.mxu0 0.0
    %1323 = vmatpush2.msra.mxu0 0.0
    %1324 = vmatprep.subr.mxu0 0.0
    %1325 = vmatpush2.msra.mxu0 0.0
    %1326 = vmatprep.mubr.f32.mxu0 0.0
    %1327 = vmatmul.mubr.f32.gmra.mxu0 %v1162
    %v1328 = vpop.f32.mrf.mxu0
    %v1329 = vadd.f32 %v406, %v1328
    %v1330 = vpop.f32.mrf.mxu0
    %v1331 = vadd.f32 %v408, %v1330
    %1332 = vmatprep.mubr.f32.mxu0 0.0
    %1333 = vmatmul.mubr.f32.gmra.mxu0 %v1165
    %v1334 = vpop.f32.mrf.mxu0
    %v1335 = vadd.f32 %v412, %v1334
    %v1336 = vpop.f32.mrf.mxu0
    %v1337 = vadd.f32 %v414, %v1336
    %1338 = vmatprep.mubr.f32.mxu0 0.0
    %1339 = vmatmul.mubr.f32.gmra.mxu0 %v1168
    %v1340 = vpop.f32.mrf.mxu0
    %v1341 = vadd.f32 %v418, %v1340
    %v1342 = vpop.f32.mrf.mxu0
    %v1343 = vadd.f32 %v420, %v1342
    %1344 = vmatprep.mubr.f32.mxu0 0.0
    %1345 = vmatmul.mubr.f32.gmra.mxu0 %v1171
    %v1346 = vpop.f32.mrf.mxu0
    %v1347 = vadd.f32 %v424, %v1346
    %v1348 = vpop.f32.mrf.mxu0
    %v1349 = vadd.f32 %v426, %v1348
    %1350 = vdwg.mxu0
    %1351 = vmatprep.subr.mxu0 0.0
    %1352 = vmatpush1.msra.mxu0 0.0
    %1353 = vmatprep.subr.mxu0 0.0
    %1354 = vmatpush1.msra.mxu0 0.0
    %1355 = vmatprep.subr.mxu0 0.0
    %1356 = vmatpush1.msra.mxu0 0.0
    %1357 = vmatprep.subr.mxu0 0.0
    %1358 = vmatpush1.msra.mxu0 0.0
    %1359 = vmatprep.subr.mxu0 0.0
    %1360 = vmatpush1.msra.mxu0 0.0
    %1361 = vmatprep.subr.mxu0 0.0
    %1362 = vmatpush1.msra.mxu0 0.0
    %1363 = vmatprep.subr.mxu0 0.0
    %1364 = vmatpush1.msra.mxu0 0.0
    %1365 = vmatprep.subr.mxu0 0.0
    %1366 = vmatpush1.msra.mxu0 0.0
    %1367 = vmatprep.subr.mxu0 0.0
    %1368 = vmatpush1.msra.mxu0 0.0
    %1369 = vmatprep.subr.mxu0 0.0
    %1370 = vmatpush1.msra.mxu0 0.0
    %1371 = vmatprep.subr.mxu0 0.0
    %1372 = vmatpush1.msra.mxu0 0.0
    %1373 = vmatprep.subr.mxu0 0.0
    %1374 = vmatpush1.msra.mxu0 0.0
    %1375 = vmatprep.subr.mxu0 %v1154
    %1376 = vmatpush1.msra.mxu0 %v1153
    %1377 = vmatprep.subr.mxu0 %v1146
    %1378 = vmatpush1.msra.mxu0 %v1145
    %1379 = vmatprep.subr.mxu0 %v1138
    %1380 = vmatpush1.msra.mxu0 %v1137
    %1381 = vmatprep.subr.mxu0 %v1130
    %1382 = vmatpush1.msra.mxu0 %v1129
    %1383 = vmatprep.subr.mxu0 0.0
    %1384 = vmatpush2.msra.mxu0 0.0
    %1385 = vmatprep.subr.mxu0 0.0
    %1386 = vmatpush2.msra.mxu0 0.0
    %1387 = vmatprep.subr.mxu0 0.0
    %1388 = vmatpush2.msra.mxu0 0.0
    %1389 = vmatprep.subr.mxu0 0.0
    %1390 = vmatpush2.msra.mxu0 0.0
    %1391 = vmatprep.subr.mxu0 0.0
    %1392 = vmatpush2.msra.mxu0 0.0
    %1393 = vmatprep.subr.mxu0 0.0
    %1394 = vmatpush2.msra.mxu0 0.0
    %1395 = vmatprep.subr.mxu0 0.0
    %1396 = vmatpush2.msra.mxu0 0.0
    %1397 = vmatprep.subr.mxu0 0.0
    %1398 = vmatpush2.msra.mxu0 0.0
    %1399 = vmatprep.subr.mxu0 0.0
    %1400 = vmatpush2.msra.mxu0 0.0
    %1401 = vmatprep.subr.mxu0 0.0
    %1402 = vmatpush2.msra.mxu0 0.0
    %1403 = vmatprep.subr.mxu0 0.0
    %1404 = vmatpush2.msra.mxu0 0.0
    %1405 = vmatprep.subr.mxu0 0.0
    %1406 = vmatpush2.msra.mxu0 0.0
    %1407 = vmatprep.subr.mxu0 0.0
    %1408 = vmatpush2.msra.mxu0 0.0
    %1409 = vmatprep.subr.mxu0 0.0
    %1410 = vmatpush2.msra.mxu0 0.0
    %1411 = vmatprep.subr.mxu0 0.0
    %1412 = vmatpush2.msra.mxu0 0.0
    %1413 = vmatprep.subr.mxu0 0.0
    %1414 = vmatpush2.msra.mxu0 0.0
    %1415 = vmatprep.mubr.f32.mxu0 0.0
    %1416 = vmatmul.mubr.f32.gmra.mxu0 %v1162
    %v1417 = vpop.f32.mrf.mxu0
    %v1418 = vadd.f32 %v549, %v1417
    %v1419 = vpop.f32.mrf.mxu0
    %v1420 = vadd.f32 %v551, %v1419
    %1421 = vmatprep.mubr.f32.mxu0 0.0
    %1422 = vmatmul.mubr.f32.gmra.mxu0 %v1165
    %v1423 = vpop.f32.mrf.mxu0
    %v1424 = vadd.f32 %v555, %v1423
    %v1425 = vpop.f32.mrf.mxu0
    %v1426 = vadd.f32 %v557, %v1425
    %1427 = vmatprep.mubr.f32.mxu0 0.0
    %1428 = vmatmul.mubr.f32.gmra.mxu0 %v1168
    %v1429 = vpop.f32.mrf.mxu0
    %v1430 = vadd.f32 %v561, %v1429
    %v1431 = vpop.f32.mrf.mxu0
    %v1432 = vadd.f32 %v563, %v1431
    %1433 = vmatprep.mubr.f32.mxu0 0.0
    %1434 = vmatmul.mubr.f32.gmra.mxu0 %v1171
    %v1435 = vpop.f32.mrf.mxu0
    %v1436 = vadd.f32 %v567, %v1435
    %v1437 = vpop.f32.mrf.mxu0
    %v1438 = vadd.f32 %v569, %v1437
    %1439 = vdwg.mxu0
    %1440 = vmatprep.subr.mxu0 0.0
    %1441 = vmatpush1.msra.mxu0 0.0
    %1442 = vmatprep.subr.mxu0 0.0
    %1443 = vmatpush1.msra.mxu0 0.0
    %1444 = vmatprep.subr.mxu0 0.0
    %1445 = vmatpush1.msra.mxu0 0.0
    %1446 = vmatprep.subr.mxu0 0.0
    %1447 = vmatpush1.msra.mxu0 0.0
    %1448 = vmatprep.subr.mxu0 0.0
    %1449 = vmatpush1.msra.mxu0 0.0
    %1450 = vmatprep.subr.mxu0 0.0
    %1451 = vmatpush1.msra.mxu0 0.0
    %1452 = vmatprep.subr.mxu0 0.0
    %1453 = vmatpush1.msra.mxu0 0.0
    %1454 = vmatprep.subr.mxu0 0.0
    %1455 = vmatpush1.msra.mxu0 0.0
    %1456 = vmatprep.subr.mxu0 0.0
    %1457 = vmatpush1.msra.mxu0 0.0
    %1458 = vmatprep.subr.mxu0 0.0
    %1459 = vmatpush1.msra.mxu0 0.0
    %1460 = vmatprep.subr.mxu0 0.0
    %1461 = vmatpush1.msra.mxu0 0.0
    %1462 = vmatprep.subr.mxu0 0.0
    %1463 = vmatpush1.msra.mxu0 0.0
    %1464 = vmatprep.subr.mxu0 %v1156
    %1465 = vmatpush1.msra.mxu0 %v1155
    %1466 = vmatprep.subr.mxu0 %v1148
    %1467 = vmatpush1.msra.mxu0 %v1147
    %1468 = vmatprep.subr.mxu0 %v1140
    %1469 = vmatpush1.msra.mxu0 %v1139
    %1470 = vmatprep.subr.mxu0 %v1132
    %1471 = vmatpush1.msra.mxu0 %v1131
    %1472 = vmatprep.subr.mxu0 0.0
    %1473 = vmatpush2.msra.mxu0 0.0
    %1474 = vmatprep.subr.mxu0 0.0
    %1475 = vmatpush2.msra.mxu0 0.0
    %1476 = vmatprep.subr.mxu0 0.0
    %1477 = vmatpush2.msra.mxu0 0.0
    %1478 = vmatprep.subr.mxu0 0.0
    %1479 = vmatpush2.msra.mxu0 0.0
    %1480 = vmatprep.subr.mxu0 0.0
    %1481 = vmatpush2.msra.mxu0 0.0
    %1482 = vmatprep.subr.mxu0 0.0
    %1483 = vmatpush2.msra.mxu0 0.0
    %1484 = vmatprep.subr.mxu0 0.0
    %1485 = vmatpush2.msra.mxu0 0.0
    %1486 = vmatprep.subr.mxu0 0.0
    %1487 = vmatpush2.msra.mxu0 0.0
    %1488 = vmatprep.subr.mxu0 0.0
    %1489 = vmatpush2.msra.mxu0 0.0
    %1490 = vmatprep.subr.mxu0 0.0
    %1491 = vmatpush2.msra.mxu0 0.0
    %1492 = vmatprep.subr.mxu0 0.0
    %1493 = vmatpush2.msra.mxu0 0.0
    %1494 = vmatprep.subr.mxu0 0.0
    %1495 = vmatpush2.msra.mxu0 0.0
    %1496 = vmatprep.subr.mxu0 0.0
    %1497 = vmatpush2.msra.mxu0 0.0
    %1498 = vmatprep.subr.mxu0 0.0
    %1499 = vmatpush2.msra.mxu0 0.0
    %1500 = vmatprep.subr.mxu0 0.0
    %1501 = vmatpush2.msra.mxu0 0.0
    %1502 = vmatprep.subr.mxu0 0.0
    %1503 = vmatpush2.msra.mxu0 0.0
    %1504 = vmatprep.mubr.f32.mxu0 0.0
    %1505 = vmatmul.mubr.f32.gmra.mxu0 %v1162
    %v1506 = vpop.f32.mrf.mxu0
    %v1507 = vadd.f32 %v692, %v1506
    %v1508 = vpop.f32.mrf.mxu0
    %v1509 = vadd.f32 %v694, %v1508
    %1510 = vmatprep.mubr.f32.mxu0 0.0
    %1511 = vmatmul.mubr.f32.gmra.mxu0 %v1165
    %v1512 = vpop.f32.mrf.mxu0
    %v1513 = vadd.f32 %v698, %v1512
    %v1514 = vpop.f32.mrf.mxu0
    %v1515 = vadd.f32 %v700, %v1514
    %1516 = vmatprep.mubr.f32.mxu0 0.0
    %1517 = vmatmul.mubr.f32.gmra.mxu0 %v1168
    %v1518 = vpop.f32.mrf.mxu0
    %v1519 = vadd.f32 %v704, %v1518
    %v1520 = vpop.f32.mrf.mxu0
    %v1521 = vadd.f32 %v706, %v1520
    %1522 = vmatprep.mubr.f32.mxu0 0.0
    %1523 = vmatmul.mubr.f32.gmra.mxu0 %v1171
    %v1524 = vpop.f32.mrf.mxu0
    %v1525 = vadd.f32 %v710, %v1524
    %v1526 = vpop.f32.mrf.mxu0
    %v1527 = vadd.f32 %v712, %v1526
    %1528 = vdwg.mxu0
    %v1529 = vmax.f32 %v1240, 0.0
    %v1530 = vmax.f32 %v1242, 0.0
    %v1531 = vmax.f32 %v1329, 0.0
    %v1532 = vmax.f32 %v1331, 0.0
    %v1533 = vmax.f32 %v1418, 0.0
    %v1534 = vmax.f32 %v1420, 0.0
    %v1535 = vmax.f32 %v1507, 0.0
    %v1536 = vmax.f32 %v1509, 0.0
    %v1537 = vmax.f32 %v1246, 0.0
    %v1538 = vmax.f32 %v1248, 0.0
    %v1539 = vmax.f32 %v1335, 0.0
    %v1540 = vmax.f32 %v1337, 0.0
    %v1541 = vmax.f32 %v1424, 0.0
    %v1542 = vmax.f32 %v1426, 0.0
    %v1543 = vmax.f32 %v1513, 0.0
    %v1544 = vmax.f32 %v1515, 0.0
    %v1545 = vmax.f32 %v1252, 0.0
    %v1546 = vmax.f32 %v1254, 0.0
    %v1547 = vmax.f32 %v1341, 0.0
    %v1548 = vmax.f32 %v1343, 0.0
    %v1549 = vmax.f32 %v1430, 0.0
    %v1550 = vmax.f32 %v1432, 0.0
    %v1551 = vmax.f32 %v1519, 0.0
    %v1552 = vmax.f32 %v1521, 0.0
    %v1553 = vmax.f32 %v1258, 0.0
    %v1554 = vmax.f32 %v1260, 0.0
    %v1555 = vmax.f32 %v1347, 0.0
    %v1556 = vmax.f32 %v1349, 0.0
    %v1557 = vmax.f32 %v1436, 0.0
    %v1558 = vmax.f32 %v1438, 0.0
    %v1559 = vmax.f32 %v1525, 0.0
    %v1560 = vmax.f32 %v1527, 0.0
    %v1561 = vld [vmem:[%s2 + $0x40] sm:$0xf]
    %v1563 = vsel %vm756, %v1561, 0
    %1565 = vmatprep.subr.mxu0 0.0
    %1566 = vmatpush1.msra.mxu0 0.0
    %1567 = vmatprep.subr.mxu0 0.0
    %1568 = vmatpush1.msra.mxu0 0.0
    %1569 = vmatprep.subr.mxu0 0.0
    %1570 = vmatpush1.msra.mxu0 0.0
    %1571 = vmatprep.subr.mxu0 0.0
    %1572 = vmatpush1.msra.mxu0 0.0
    %1573 = vmatprep.subr.mxu0 0.0
    %1574 = vmatpush1.msra.mxu0 0.0
    %1575 = vmatprep.subr.mxu0 0.0
    %1576 = vmatpush1.msra.mxu0 0.0
    %1577 = vmatprep.subr.mxu0 0.0
    %1578 = vmatpush1.msra.mxu0 0.0
    %1579 = vmatprep.subr.mxu0 0.0
    %1580 = vmatpush1.msra.mxu0 0.0
    %1581 = vmatprep.subr.mxu0 0.0
    %1582 = vmatpush1.msra.mxu0 0.0
    %1583 = vmatprep.subr.mxu0 0.0
    %1584 = vmatpush1.msra.mxu0 0.0
    %1585 = vmatprep.subr.mxu0 0.0
    %1586 = vmatpush1.msra.mxu0 0.0
    %1587 = vmatprep.subr.mxu0 0.0
    %1588 = vmatpush1.msra.mxu0 0.0
    %1589 = vmatprep.subr.mxu0 %v1554
    %1590 = vmatpush1.msra.mxu0 %v1553
    %1591 = vmatprep.subr.mxu0 %v1546
    %1592 = vmatpush1.msra.mxu0 %v1545
    %1593 = vmatprep.subr.mxu0 %v1538
    %1594 = vmatpush1.msra.mxu0 %v1537
    %1595 = vmatprep.subr.mxu0 %v1530
    %1596 = vmatpush1.msra.mxu0 %v1529
    %1597 = vmatprep.subr.mxu0 0.0
    %1598 = vmatpush2.msra.mxu0 0.0
    %1599 = vmatprep.subr.mxu0 0.0
    %1600 = vmatpush2.msra.mxu0 0.0
    %1601 = vmatprep.subr.mxu0 0.0
    %1602 = vmatpush2.msra.mxu0 0.0
    %1603 = vmatprep.subr.mxu0 0.0
    %1604 = vmatpush2.msra.mxu0 0.0
    %1605 = vmatprep.subr.mxu0 0.0
    %1606 = vmatpush2.msra.mxu0 0.0
    %1607 = vmatprep.subr.mxu0 0.0
    %1608 = vmatpush2.msra.mxu0 0.0
    %1609 = vmatprep.subr.mxu0 0.0
    %1610 = vmatpush2.msra.mxu0 0.0
    %1611 = vmatprep.subr.mxu0 0.0
    %1612 = vmatpush2.msra.mxu0 0.0
    %1613 = vmatprep.subr.mxu0 0.0
    %1614 = vmatpush2.msra.mxu0 0.0
    %1615 = vmatprep.subr.mxu0 0.0
    %1616 = vmatpush2.msra.mxu0 0.0
    %1617 = vmatprep.subr.mxu0 0.0
    %1618 = vmatpush2.msra.mxu0 0.0
    %1619 = vmatprep.subr.mxu0 0.0
    %1620 = vmatpush2.msra.mxu0 0.0
    %1621 = vmatprep.subr.mxu0 0.0
    %1622 = vmatpush2.msra.mxu0 0.0
    %1623 = vmatprep.subr.mxu0 0.0
    %1624 = vmatpush2.msra.mxu0 0.0
    %1625 = vmatprep.subr.mxu0 0.0
    %1626 = vmatpush2.msra.mxu0 0.0
    %1627 = vmatprep.subr.mxu0 0.0
    %1628 = vmatpush2.msra.mxu0 0.0
    %1629 = vmatprep.mubr.f32.mxu0 0.0
    %1630 = vmatmul.mubr.f32.gmra.mxu0 %v1563
    %v1631 = vpop.f32.mrf.mxu0
    %v1632 = vadd.f32 %v287, %v1631
    %v1633 = vpop.f32.mrf.mxu0
    %v1634 = vadd.f32 %v289, %v1633
    %1635 = vdwg.mxu0
    %1636 = vmatprep.subr.mxu0 0.0
    %1637 = vmatpush1.msra.mxu0 0.0
    %1638 = vmatprep.subr.mxu0 0.0
    %1639 = vmatpush1.msra.mxu0 0.0
    %1640 = vmatprep.subr.mxu0 0.0
    %1641 = vmatpush1.msra.mxu0 0.0
    %1642 = vmatprep.subr.mxu0 0.0
    %1643 = vmatpush1.msra.mxu0 0.0
    %1644 = vmatprep.subr.mxu0 0.0
    %1645 = vmatpush1.msra.mxu0 0.0
    %1646 = vmatprep.subr.mxu0 0.0
    %1647 = vmatpush1.msra.mxu0 0.0
    %1648 = vmatprep.subr.mxu0 0.0
    %1649 = vmatpush1.msra.mxu0 0.0
    %1650 = vmatprep.subr.mxu0 0.0
    %1651 = vmatpush1.msra.mxu0 0.0
    %1652 = vmatprep.subr.mxu0 0.0
    %1653 = vmatpush1.msra.mxu0 0.0
    %1654 = vmatprep.subr.mxu0 0.0
    %1655 = vmatpush1.msra.mxu0 0.0
    %1656 = vmatprep.subr.mxu0 0.0
    %1657 = vmatpush1.msra.mxu0 0.0
    %1658 = vmatprep.subr.mxu0 0.0
    %1659 = vmatpush1.msra.mxu0 0.0
    %1660 = vmatprep.subr.mxu0 %v1556
    %1661 = vmatpush1.msra.mxu0 %v1555
    %1662 = vmatprep.subr.mxu0 %v1548
    %1663 = vmatpush1.msra.mxu0 %v1547
    %1664 = vmatprep.subr.mxu0 %v1540
    %1665 = vmatpush1.msra.mxu0 %v1539
    %1666 = vmatprep.subr.mxu0 %v1532
    %1667 = vmatpush1.msra.mxu0 %v1531
    %1668 = vmatprep.subr.mxu0 0.0
    %1669 = vmatpush2.msra.mxu0 0.0
    %1670 = vmatprep.subr.mxu0 0.0
    %1671 = vmatpush2.msra.mxu0 0.0
    %1672 = vmatprep.subr.mxu0 0.0
    %1673 = vmatpush2.msra.mxu0 0.0
    %1674 = vmatprep.subr.mxu0 0.0
    %1675 = vmatpush2.msra.mxu0 0.0
    %1676 = vmatprep.subr.mxu0 0.0
    %1677 = vmatpush2.msra.mxu0 0.0
    %1678 = vmatprep.subr.mxu0 0.0
    %1679 = vmatpush2.msra.mxu0 0.0
    %1680 = vmatprep.subr.mxu0 0.0
    %1681 = vmatpush2.msra.mxu0 0.0
    %1682 = vmatprep.subr.mxu0 0.0
    %1683 = vmatpush2.msra.mxu0 0.0
    %1684 = vmatprep.subr.mxu0 0.0
    %1685 = vmatpush2.msra.mxu0 0.0
    %1686 = vmatprep.subr.mxu0 0.0
    %1687 = vmatpush2.msra.mxu0 0.0
    %1688 = vmatprep.subr.mxu0 0.0
    %1689 = vmatpush2.msra.mxu0 0.0
    %1690 = vmatprep.subr.mxu0 0.0
    %1691 = vmatpush2.msra.mxu0 0.0
    %1692 = vmatprep.subr.mxu0 0.0
    %1693 = vmatpush2.msra.mxu0 0.0
    %1694 = vmatprep.subr.mxu0 0.0
    %1695 = vmatpush2.msra.mxu0 0.0
    %1696 = vmatprep.subr.mxu0 0.0
    %1697 = vmatpush2.msra.mxu0 0.0
    %1698 = vmatprep.subr.mxu0 0.0
    %1699 = vmatpush2.msra.mxu0 0.0
    %1700 = vmatprep.mubr.f32.mxu0 0.0
    %1701 = vmatmul.mubr.f32.gmra.mxu0 %v1563
    %v1702 = vpop.f32.mrf.mxu0
    %v1703 = vadd.f32 %v430, %v1702
    %v1704 = vpop.f32.mrf.mxu0
    %v1705 = vadd.f32 %v432, %v1704
    %1706 = vdwg.mxu0
    %1707 = vmatprep.subr.mxu0 0.0
    %1708 = vmatpush1.msra.mxu0 0.0
    %1709 = vmatprep.subr.mxu0 0.0
    %1710 = vmatpush1.msra.mxu0 0.0
    %1711 = vmatprep.subr.mxu0 0.0
    %1712 = vmatpush1.msra.mxu0 0.0
    %1713 = vmatprep.subr.mxu0 0.0
    %1714 = vmatpush1.msra.mxu0 0.0
    %1715 = vmatprep.subr.mxu0 0.0
    %1716 = vmatpush1.msra.mxu0 0.0
    %1717 = vmatprep.subr.mxu0 0.0
    %1718 = vmatpush1.msra.mxu0 0.0
    %1719 = vmatprep.subr.mxu0 0.0
    %1720 = vmatpush1.msra.mxu0 0.0
    %1721 = vmatprep.subr.mxu0 0.0
    %1722 = vmatpush1.msra.mxu0 0.0
    %1723 = vmatprep.subr.mxu0 0.0
    %1724 = vmatpush1.msra.mxu0 0.0
    %1725 = vmatprep.subr.mxu0 0.0
    %1726 = vmatpush1.msra.mxu0 0.0
    %1727 = vmatprep.subr.mxu0 0.0
    %1728 = vmatpush1.msra.mxu0 0.0
    %1729 = vmatprep.subr.mxu0 0.0
    %1730 = vmatpush1.msra.mxu0 0.0
    %1731 = vmatprep.subr.mxu0 %v1558
    %1732 = vmatpush1.msra.mxu0 %v1557
    %1733 = vmatprep.subr.mxu0 %v1550
    %1734 = vmatpush1.msra.mxu0 %v1549
    %1735 = vmatprep.subr.mxu0 %v1542
    %1736 = vmatpush1.msra.mxu0 %v1541
    %1737 = vmatprep.subr.mxu0 %v1534
    %1738 = vmatpush1.msra.mxu0 %v1533
    %1739 = vmatprep.subr.mxu0 0.0
    %1740 = vmatpush2.msra.mxu0 0.0
    %1741 = vmatprep.subr.mxu0 0.0
    %1742 = vmatpush2.msra.mxu0 0.0
    %1743 = vmatprep.subr.mxu0 0.0
    %1744 = vmatpush2.msra.mxu0 0.0
    %1745 = vmatprep.subr.mxu0 0.0
    %1746 = vmatpush2.msra.mxu0 0.0
    %1747 = vmatprep.subr.mxu0 0.0
    %1748 = vmatpush2.msra.mxu0 0.0
    %1749 = vmatprep.subr.mxu0 0.0
    %1750 = vmatpush2.msra.mxu0 0.0
    %1751 = vmatprep.subr.mxu0 0.0
    %1752 = vmatpush2.msra.mxu0 0.0
    %1753 = vmatprep.subr.mxu0 0.0
    %1754 = vmatpush2.msra.mxu0 0.0
    %1755 = vmatprep.subr.mxu0 0.0
    %1756 = vmatpush2.msra.mxu0 0.0
    %1757 = vmatprep.subr.mxu0 0.0
    %1758 = vmatpush2.msra.mxu0 0.0
    %1759 = vmatprep.subr.mxu0 0.0
    %1760 = vmatpush2.msra.mxu0 0.0
    %1761 = vmatprep.subr.mxu0 0.0
    %1762 = vmatpush2.msra.mxu0 0.0
    %1763 = vmatprep.subr.mxu0 0.0
    %1764 = vmatpush2.msra.mxu0 0.0
    %1765 = vmatprep.subr.mxu0 0.0
    %1766 = vmatpush2.msra.mxu0 0.0
    %1767 = vmatprep.subr.mxu0 0.0
    %1768 = vmatpush2.msra.mxu0 0.0
    %1769 = vmatprep.subr.mxu0 0.0
    %1770 = vmatpush2.msra.mxu0 0.0
    %1771 = vmatprep.mubr.f32.mxu0 0.0
    %1772 = vmatmul.mubr.f32.gmra.mxu0 %v1563
    %v1773 = vpop.f32.mrf.mxu0
    %v1774 = vadd.f32 %v573, %v1773
    %v1775 = vpop.f32.mrf.mxu0
    %v1776 = vadd.f32 %v575, %v1775
    %1777 = vdwg.mxu0
    %1778 = vmatprep.subr.mxu0 0.0
    %1779 = vmatpush1.msra.mxu0 0.0
    %1780 = vmatprep.subr.mxu0 0.0
    %1781 = vmatpush1.msra.mxu0 0.0
    %1782 = vmatprep.subr.mxu0 0.0
    %1783 = vmatpush1.msra.mxu0 0.0
    %1784 = vmatprep.subr.mxu0 0.0
    %1785 = vmatpush1.msra.mxu0 0.0
    %1786 = vmatprep.subr.mxu0 0.0
    %1787 = vmatpush1.msra.mxu0 0.0
    %1788 = vmatprep.subr.mxu0 0.0
    %1789 = vmatpush1.msra.mxu0 0.0
    %1790 = vmatprep.subr.mxu0 0.0
    %1791 = vmatpush1.msra.mxu0 0.0
    %1792 = vmatprep.subr.mxu0 0.0
    %1793 = vmatpush1.msra.mxu0 0.0
    %1794 = vmatprep.subr.mxu0 0.0
    %1795 = vmatpush1.msra.mxu0 0.0
    %1796 = vmatprep.subr.mxu0 0.0
    %1797 = vmatpush1.msra.mxu0 0.0
    %1798 = vmatprep.subr.mxu0 0.0
    %1799 = vmatpush1.msra.mxu0 0.0
    %1800 = vmatprep.subr.mxu0 0.0
    %1801 = vmatpush1.msra.mxu0 0.0
    %1802 = vmatprep.subr.mxu0 %v1560
    %1803 = vmatpush1.msra.mxu0 %v1559
    %1804 = vmatprep.subr.mxu0 %v1552
    %1805 = vmatpush1.msra.mxu0 %v1551
    %1806 = vmatprep.subr.mxu0 %v1544
    %1807 = vmatpush1.msra.mxu0 %v1543
    %1808 = vmatprep.subr.mxu0 %v1536
    %1809 = vmatpush1.msra.mxu0 %v1535
    %1810 = vmatprep.subr.mxu0 0.0
    %1811 = vmatpush2.msra.mxu0 0.0
    %1812 = vmatprep.subr.mxu0 0.0
    %1813 = vmatpush2.msra.mxu0 0.0
    %1814 = vmatprep.subr.mxu0 0.0
    %1815 = vmatpush2.msra.mxu0 0.0
    %1816 = vmatprep.subr.mxu0 0.0
    %1817 = vmatpush2.msra.mxu0 0.0
    %1818 = vmatprep.subr.mxu0 0.0
    %1819 = vmatpush2.msra.mxu0 0.0
    %1820 = vmatprep.subr.mxu0 0.0
    %1821 = vmatpush2.msra.mxu0 0.0
    %1822 = vmatprep.subr.mxu0 0.0
    %1823 = vmatpush2.msra.mxu0 0.0
    %1824 = vmatprep.subr.mxu0 0.0
    %1825 = vmatpush2.msra.mxu0 0.0
    %1826 = vmatprep.subr.mxu0 0.0
    %1827 = vmatpush2.msra.mxu0 0.0
    %1828 = vmatprep.subr.mxu0 0.0
    %1829 = vmatpush2.msra.mxu0 0.0
    %1830 = vmatprep.subr.mxu0 0.0
    %1831 = vmatpush2.msra.mxu0 0.0
    %1832 = vmatprep.subr.mxu0 0.0
    %1833 = vmatpush2.msra.mxu0 0.0
    %1834 = vmatprep.subr.mxu0 0.0
    %1835 = vmatpush2.msra.mxu0 0.0
    %1836 = vmatprep.subr.mxu0 0.0
    %1837 = vmatpush2.msra.mxu0 0.0
    %1838 = vmatprep.subr.mxu0 0.0
    %1839 = vmatpush2.msra.mxu0 0.0
    %1840 = vmatprep.subr.mxu0 0.0
    %1841 = vmatpush2.msra.mxu0 0.0
    %1842 = vmatprep.mubr.f32.mxu0 0.0
    %1843 = vmatmul.mubr.f32.gmra.mxu0 %v1563
    %v1844 = vpop.f32.mrf.mxu0
    %v1845 = vadd.f32 %v716, %v1844
    %v1846 = vpop.f32.mrf.mxu0
    %v1847 = vadd.f32 %v718, %v1846
    %1848 = vdwg.mxu0
    %v1849 = vtanh.pop %v1632
    %v1850 = vtanh.pop %v1634
    %v1851 = vtanh.pop %v1703
    %v1852 = vtanh.pop %v1705
    %v1853 = vtanh.pop %v1774
    %v1854 = vtanh.pop %v1776
    %v1855 = vtanh.pop %v1845
    %v1856 = vtanh.pop %v1847
    %v1865 = vcombine.low %v1849, %v1850
    %v1866 = vcombine.low %v1851, %v1852
    %v1867 = vcombine.low %v1853, %v1854
    %v1868 = vcombine.low %v1855, %v1856
    %1873 = vst [vmem:[#allocation3] sm:$0xff] %v1865
    %1874 = vst [vmem:[#allocation3 + $0x8] sm:$0xff] %v1866
    %1875 = vst [vmem:[#allocation3 + $0x10] sm:$0xff] %v1867
    %vm1876 = vcmask 1043456
    %vm1877 = vcmask 850948
    %vm1878 = vmor %vm1877, %vm1876
    %1879 = vst.msk [vmem:[#allocation3 + $0x18] sm:$0xff] %vm1878, %v1868
    // Predicated region
    $region14: #{tpu_custom_call.1} parent=1 // pred_check
      _
    $region15: #{tpu_custom_call.1} parent=1 // pred_check_branch
      %1881 = sbr.rel (0) target = $region17
    $region16: #{tpu_custom_call.1} parent=1 // pred_region
      %s1883 = ssub.s32 512, 512
      %1884 = vsyncadd [#allocation4], %s1883
      %s1886 = sshll.u32 [#allocation3], 4
      %s1887 = int_to_ptr.vmem [resolvable:$true] %s1886
      %1889 = dma.vmem_to_hbm [thread:$0]  %s1887, 512, %s3, [#allocation4]
    $region17: #{tpu_custom_call.1} parent=1 // pred_fallthru
      _
    // Predicated region
    $region18: #{tpu_custom_call.1} parent=1 // pred_check
      _
    $region19: #{tpu_custom_call.1} parent=1 // pred_check_branch
      %1891 = sbr.rel (0) target = $region21
    $region20: #{tpu_custom_call.1} parent=1 // pred_region
      %1892 = dma.done [#allocation4], 512
    $region21: #{tpu_custom_call.1} parent=1 // pred_fallthru
      _
    %1893 = vsyncpa [#allocation4], 1

</llo_original>
